<compile_context>
chip_gen: v7x
topology: tpu7x:2x2x1
jax: 0.10.0
libtpu: 0.0.40
codegen_flags: <defaults>
</compile_context>

<pallas_src>
import functools

import jax
import jax.numpy as jnp
from jax.experimental import pallas as pl
from jax.experimental.pallas import tpu as pltpu


def _lstm_depth_marker_kernel(
    x_ref, fcw_ref, fcb_ref,
    wih0_ref, whh0_ref, b0_ref,
    wih1_ref, whh1_ref, b1_ref,
    wp_ref, bp_ref,
    out_ref,
    *, hidden_dim, max_seq_len, stop_token,
):
    H = hidden_dim
    H2 = 2 * H

    x = x_ref[...].astype(jnp.bfloat16)                       # (B, D_in)
    B = x.shape[0]

    # fc: Linear with BatchNorm1d (eval) already folded into weight/bias -> ReLU
    # (Dropout = identity in eval)
    feat = jnp.dot(x, fcw_ref[...], preferred_element_type=jnp.float32) + fcb_ref[...]
    feat = jnp.maximum(feat, 0.0)                             # (B, H) f32
    feat_b = feat.astype(jnp.bfloat16)

    # Loop-invariant layer-0 input contribution (both directions, gate-interleaved):
    # seq_len == 1 and the fc output never changes, so compute it once.
    pre0 = (jnp.dot(feat_b, wih0_ref[...], preferred_element_type=jnp.float32)
            + b0_ref[...])                                    # (B, 8H)

    # Hoist weight/bias loads out of the unrolled loop.
    whh0 = whh0_ref[...]                                      # (2H, 8H) bf16, block-diag
    wih1 = wih1_ref[...]                                      # (2H, 8H) bf16
    whh1 = whh1_ref[...]                                      # (2H, 8H) bf16, block-diag
    b1 = b1_ref[...]                                          # (1, 8H)  f32
    wp = wp_ref[...]                                          # (1, 2H)  f32

    zeros2 = jnp.zeros((B, H2), jnp.float32)
    h0, c0 = zeros2, zeros2                                   # layer 0, [fwd|bwd]
    h1, c1 = zeros2, zeros2                                   # layer 1, [fwd|bwd]

    def gates_to_state(g, c):
        # g: (B, 8H) with contiguous gate blocks [i | f | g | o], each (B, 2H)
        i = jax.nn.sigmoid(g[:, 0 * H2:1 * H2])
        f = jax.nn.sigmoid(g[:, 1 * H2:2 * H2])
        gg = jnp.tanh(g[:, 2 * H2:3 * H2])
        o = jax.nn.sigmoid(g[:, 3 * H2:4 * H2])
        c_new = f * c + i * gg
        h_new = o * jnp.tanh(c_new)
        return h_new, c_new

    markers = []
    for _ in range(max_seq_len):                              # static unroll; state carries
        # layer 0: one block-diagonal hidden matmul serves both directions
        g0 = pre0 + jnp.dot(h0.astype(jnp.bfloat16), whh0,
                            preferred_element_type=jnp.float32)          # (B, 8H)
        h0, c0 = gates_to_state(g0, c0)

        # layer 1: input is layer-0 [fwd|bwd] output, already in carried layout
        g1 = (jnp.dot(h0.astype(jnp.bfloat16), wih1, preferred_element_type=jnp.float32)
              + jnp.dot(h1.astype(jnp.bfloat16), whh1, preferred_element_type=jnp.float32)
              + b1)                                                      # (B, 8H)
        h1, c1 = gates_to_state(g1, c1)

        # predictor head: (B,2H) dot (2H,1) as VPU multiply + lane reduction (no MXU push)
        markers.append(jnp.sum(h1 * wp, axis=-1, keepdims=True))         # (B, 1)

    dm = jnp.concatenate(markers, axis=-1) + bp_ref[...]      # (B, max_seq_len)
    dm = jnp.where(dm > stop_token - 0.01, jnp.full_like(dm, stop_token), dm)
    out_ref[...] = dm


def _pack_dir_gates(w, H):
    """(2, K, 4H) per-direction [i|f|g|o] -> (K, 8H) gate-interleaved [i_f i_b|f_f f_b|g_f g_b|o_f o_b]."""
    cols = []
    for g in range(4):
        cols.append(w[0, :, g * H:(g + 1) * H])
        cols.append(w[1, :, g * H:(g + 1) * H])
    return jnp.concatenate(cols, axis=-1)


def _pack_blockdiag_hh(w_hh, H):
    """(2, H, 4H) -> (2H, 8H) block-diagonal per direction, gate-interleaved columns."""
    out = jnp.zeros((2 * H, 8 * H), w_hh.dtype)
    for d in range(2):
        for g in range(4):
            out = out.at[d * H:(d + 1) * H,
                         g * 2 * H + d * H: g * 2 * H + (d + 1) * H].set(
                w_hh[d, :, g * H:(g + 1) * H])
    return out


def lstm_depth_marker_predictor(x, params, *, hidden_dim, max_seq_len, stop_token=1.0):
    H = hidden_dim
    B = x.shape[0]

    # ---- weight pre-packing (plain JAX, outside the kernel) ----
    # Fold eval-mode BatchNorm into the fc Linear.
    fc_w = (params["fc_w"] * params["bn_scale"]).astype(jnp.bfloat16)     # (D_in, H)
    fc_b = params["fc_b"] * params["bn_scale"] + params["bn_shift"]       # (1, H) f32

    wih0 = _pack_dir_gates(params["w_ih0"], H).astype(jnp.bfloat16)       # (H, 8H)
    whh0 = _pack_blockdiag_hh(params["w_hh0"], H).astype(jnp.bfloat16)    # (2H, 8H)
    b0 = _pack_dir_gates(params["b0"], H)                                 # (1, 8H) f32

    wih1 = _pack_dir_gates(params["w_ih1"], H).astype(jnp.bfloat16)       # (2H, 8H)
    whh1 = _pack_blockdiag_hh(params["w_hh1"], H).astype(jnp.bfloat16)    # (2H, 8H)
    b1 = _pack_dir_gates(params["b1"], H)                                 # (1, 8H) f32

    wp = params["wp"].T                                                   # (1, 2H) f32
    bp = params["bp"]                                                     # (1, 1)  f32

    args = (x, fc_w, fc_b, wih0, whh0, b0, wih1, whh1, b1, wp, bp)

    kernel = functools.partial(
        _lstm_depth_marker_kernel,
        hidden_dim=hidden_dim, max_seq_len=max_seq_len, stop_token=stop_token,
    )
    # Everything (weights + activations) is < 1 MiB total: whole-array VMEM residency,
    # no grid/pipelining needed (the recurrence is strictly sequential anyway).
    vmem = pl.BlockSpec(memory_space=pltpu.MemorySpace.VMEM)
    return pl.pallas_call(
        kernel,
        out_shape=jax.ShapeDtypeStruct((B, max_seq_len), jnp.float32),
        in_specs=[vmem] * len(args),
        out_specs=vmem,
    )(*args)


def init_params(key, input_dim, hidden_dim):
    """Deterministic synthetic parameters matching the PyTorch module's shapes."""
    H = hidden_dim
    ks = jax.random.split(key, 12)

    def u(k, shape, scale):
        return jax.random.uniform(k, shape, jnp.float32, -scale, scale)

    k_fc = 1.0 / float(input_dim) ** 0.5
    k_h = 1.0 / float(H) ** 0.5
    k_2h = 1.0 / float(2 * H) ** 0.5

    params = {
        # fc.Linear(input_dim, H): weight (H, D_in) stored transposed -> (D_in, H)
        "fc_w": u(ks[0], (input_dim, H), k_fc),
        "fc_b": u(ks[1], (1, H), k_fc),
    }

    # BatchNorm1d(H) eval with default init: gamma=1, beta=0, running_mean=0, running_var=1
    eps = 1e-5
    gamma = jnp.ones((1, H), jnp.float32)
    beta = jnp.zeros((1, H), jnp.float32)
    r_mean = jnp.zeros((1, H), jnp.float32)
    r_var = jnp.ones((1, H), jnp.float32)
    bn_scale = gamma / jnp.sqrt(r_var + eps)
    params["bn_scale"] = bn_scale
    params["bn_shift"] = beta - r_mean * bn_scale

    # LSTM layer 0 (input H), 2 directions: weight_ih (4H, H)^T, weight_hh (4H, H)^T, bias_ih+bias_hh
    params["w_ih0"] = u(ks[2], (2, H, 4 * H), k_h)
    params["w_hh0"] = u(ks[3], (2, H, 4 * H), k_h)
    params["b0"] = u(ks[4], (2, 1, 4 * H), k_h) + u(ks[5], (2, 1, 4 * H), k_h)

    # LSTM layer 1 (input 2H, bidirectional concat from layer 0)
    params["w_ih1"] = u(ks[6], (2, 2 * H, 4 * H), k_h)
    params["w_hh1"] = u(ks[7], (2, H, 4 * H), k_h)
    params["b1"] = u(ks[8], (2, 1, 4 * H), k_h) + u(ks[9], (2, 1, 4 * H), k_h)

    # predictor Linear(2H, 1): weight (1, 2H) stored transposed -> (2H, 1)
    params["wp"] = u(ks[10], (2 * H, 1), k_2h)
    params["bp"] = u(ks[11], (1, 1), k_2h)
    return params


if __name__ == "__main__":
    B, input_dim, hidden_dim, max_seq_len = 8, 16, 32, 8

    key = jax.random.PRNGKey(0)
    kx, kp = jax.random.split(key)
    x = jax.random.normal(kx, (B, input_dim), jnp.float32)
    params = init_params(kp, input_dim, hidden_dim)

    out = lstm_depth_marker_predictor(
        x, params, hidden_dim=hidden_dim, max_seq_len=max_seq_len, stop_token=1.0
    )
    out = jax.block_until_ready(out)

    assert out.shape == (B, max_seq_len), out.shape
    assert bool(jnp.all(jnp.isfinite(out)))
    print("KERNEL_OK")
</pallas_src>

<mosaic_0001>
module attributes {stable_mosaic.version = 11 : i64} {
  func.func @_lstm_depth_marker_kernel(%arg0: memref<8x16xf32, #tpu.memory_space<vmem>>, %arg1: memref<16x32xbf16, #tpu.memory_space<vmem>>, %arg2: memref<1x32xf32, #tpu.memory_space<vmem>>, %arg3: memref<32x256xbf16, #tpu.memory_space<vmem>>, %arg4: memref<64x256xbf16, #tpu.memory_space<vmem>>, %arg5: memref<1x256xf32, #tpu.memory_space<vmem>>, %arg6: memref<64x256xbf16, #tpu.memory_space<vmem>>, %arg7: memref<64x256xbf16, #tpu.memory_space<vmem>>, %arg8: memref<1x256xf32, #tpu.memory_space<vmem>>, %arg9: memref<1x64xf32, #tpu.memory_space<vmem>>, %arg10: memref<1x1xf32, #tpu.memory_space<vmem>>, %arg11: memref<8x8xf32, #tpu.memory_space<vmem>>) attributes {dimension_semantics = [], scalar_prefetch = 0 : i64, scratch_operands = 0 : i64, tpu.core_type = #tpu.core_type<tc>} {
    %c0 = arith.constant 0 : index
    %c0_0 = arith.constant 0 : index
    %0 = vector.load %arg0[%c0, %c0_0] : memref<8x16xf32, #tpu.memory_space<vmem>>, vector<8x16xf32>
    %1 = arith.truncf %0 : vector<8x16xf32> to vector<8x16xbf16>
    %c0_1 = arith.constant 0 : index
    %c0_2 = arith.constant 0 : index
    %2 = vector.load %arg1[%c0_1, %c0_2] : memref<16x32xbf16, #tpu.memory_space<vmem>>, vector<16x32xbf16>
    %cst = arith.constant dense<0.000000e+00> : vector<8x32xf32>
    %3 = tpu.matmul %1, %2, %cst {dimension_numbers = #tpu.dot_dimension_numbers<[1], [0], [0], [1], [0, 0, 1, 1], [], []>} : vector<8x16xbf16>, vector<16x32xbf16>, vector<8x32xf32> -> vector<8x32xf32>
    %c0_3 = arith.constant 0 : index
    %c0_4 = arith.constant 0 : index
    %4 = vector.load %arg2[%c0_3, %c0_4] : memref<1x32xf32, #tpu.memory_space<vmem>>, vector<1x32xf32>
    %5 = vector.broadcast %4 : vector<1x32xf32> to vector<8x32xf32>
    %6 = arith.addf %3, %5 : vector<8x32xf32>
    %cst_5 = arith.constant 0.000000e+00 : f32
    %7 = vector.broadcast %cst_5 : f32 to vector<8x32xf32>
    %8 = arith.maximumf %6, %7 : vector<8x32xf32>
    %9 = arith.truncf %8 : vector<8x32xf32> to vector<8x32xbf16>
    %c0_6 = arith.constant 0 : index
    %c0_7 = arith.constant 0 : index
    %10 = vector.load %arg3[%c0_6, %c0_7] : memref<32x256xbf16, #tpu.memory_space<vmem>>, vector<32x256xbf16>
    %cst_8 = arith.constant dense<0.000000e+00> : vector<8x256xf32>
    %11 = tpu.matmul %9, %10, %cst_8 {dimension_numbers = #tpu.dot_dimension_numbers<[1], [0], [0], [1], [0, 0, 1, 1], [], []>} : vector<8x32xbf16>, vector<32x256xbf16>, vector<8x256xf32> -> vector<8x256xf32>
    %c0_9 = arith.constant 0 : index
    %c0_10 = arith.constant 0 : index
    %12 = vector.load %arg5[%c0_9, %c0_10] : memref<1x256xf32, #tpu.memory_space<vmem>>, vector<1x256xf32>
    %13 = vector.broadcast %12 : vector<1x256xf32> to vector<8x256xf32>
    %14 = arith.addf %11, %13 : vector<8x256xf32>
    %c0_11 = arith.constant 0 : index
    %c0_12 = arith.constant 0 : index
    %15 = vector.load %arg4[%c0_11, %c0_12] : memref<64x256xbf16, #tpu.memory_space<vmem>>, vector<64x256xbf16>
    %c0_13 = arith.constant 0 : index
    %c0_14 = arith.constant 0 : index
    %16 = vector.load %arg6[%c0_13, %c0_14] : memref<64x256xbf16, #tpu.memory_space<vmem>>, vector<64x256xbf16>
    %c0_15 = arith.constant 0 : index
    %c0_16 = arith.constant 0 : index
    %17 = vector.load %arg7[%c0_15, %c0_16] : memref<64x256xbf16, #tpu.memory_space<vmem>>, vector<64x256xbf16>
    %c0_17 = arith.constant 0 : index
    %c0_18 = arith.constant 0 : index
    %18 = vector.load %arg8[%c0_17, %c0_18] : memref<1x256xf32, #tpu.memory_space<vmem>>, vector<1x256xf32>
    %c0_19 = arith.constant 0 : index
    %c0_20 = arith.constant 0 : index
    %19 = vector.load %arg9[%c0_19, %c0_20] : memref<1x64xf32, #tpu.memory_space<vmem>>, vector<1x64xf32>
    %cst_21 = arith.constant 0.000000e+00 : f32
    %20 = vector.broadcast %cst_21 : f32 to vector<8x64xf32>
    %21 = arith.truncf %20 : vector<8x64xf32> to vector<8x64xbf16>
    %cst_22 = arith.constant dense<0.000000e+00> : vector<8x256xf32>
    %22 = tpu.matmul %21, %15, %cst_22 {dimension_numbers = #tpu.dot_dimension_numbers<[1], [0], [0], [1], [0, 0, 1, 1], [], []>} : vector<8x64xbf16>, vector<64x256xbf16>, vector<8x256xf32> -> vector<8x256xf32>
    %23 = arith.addf %14, %22 : vector<8x256xf32>
    %24 = vector.extract_strided_slice %23 {offsets = [0, 0], sizes = [8, 64], strides = [1, 1]} : vector<8x256xf32> to vector<8x64xf32>
    %25 = arith.negf %24 : vector<8x64xf32>
    %26 = math.exp %25 : vector<8x64xf32>
    %cst_23 = arith.constant 1.000000e+00 : f32
    %27 = vector.broadcast %cst_23 : f32 to vector<8x64xf32>
    %28 = arith.addf %27, %26 : vector<8x64xf32>
    %29 = arith.divf %27, %28 : vector<8x64xf32>
    %30 = vector.extract_strided_slice %23 {offsets = [0, 64], sizes = [8, 64], strides = [1, 1]} : vector<8x256xf32> to vector<8x64xf32>
    %31 = arith.negf %30 : vector<8x64xf32>
    %32 = math.exp %31 : vector<8x64xf32>
    %cst_24 = arith.constant 1.000000e+00 : f32
    %33 = vector.broadcast %cst_24 : f32 to vector<8x64xf32>
    %34 = arith.addf %33, %32 : vector<8x64xf32>
    %35 = arith.divf %33, %34 : vector<8x64xf32>
    %36 = vector.extract_strided_slice %23 {offsets = [0, 128], sizes = [8, 64], strides = [1, 1]} : vector<8x256xf32> to vector<8x64xf32>
    %37 = math.tanh %36 : vector<8x64xf32>
    %38 = vector.extract_strided_slice %23 {offsets = [0, 192], sizes = [8, 64], strides = [1, 1]} : vector<8x256xf32> to vector<8x64xf32>
    %39 = arith.negf %38 : vector<8x64xf32>
    %40 = math.exp %39 : vector<8x64xf32>
    %cst_25 = arith.constant 1.000000e+00 : f32
    %41 = vector.broadcast %cst_25 : f32 to vector<8x64xf32>
    %42 = arith.addf %41, %40 : vector<8x64xf32>
    %43 = arith.divf %41, %42 : vector<8x64xf32>
    %44 = arith.mulf %35, %20 : vector<8x64xf32>
    %45 = arith.mulf %29, %37 : vector<8x64xf32>
    %46 = arith.addf %44, %45 : vector<8x64xf32>
    %47 = math.tanh %46 : vector<8x64xf32>
    %48 = arith.mulf %43, %47 : vector<8x64xf32>
    %49 = arith.truncf %48 : vector<8x64xf32> to vector<8x64xbf16>
    %cst_26 = arith.constant dense<0.000000e+00> : vector<8x256xf32>
    %50 = tpu.matmul %49, %16, %cst_26 {dimension_numbers = #tpu.dot_dimension_numbers<[1], [0], [0], [1], [0, 0, 1, 1], [], []>} : vector<8x64xbf16>, vector<64x256xbf16>, vector<8x256xf32> -> vector<8x256xf32>
    %51 = arith.truncf %20 : vector<8x64xf32> to vector<8x64xbf16>
    %cst_27 = arith.constant dense<0.000000e+00> : vector<8x256xf32>
    %52 = tpu.matmul %51, %17, %cst_27 {dimension_numbers = #tpu.dot_dimension_numbers<[1], [0], [0], [1], [0, 0, 1, 1], [], []>} : vector<8x64xbf16>, vector<64x256xbf16>, vector<8x256xf32> -> vector<8x256xf32>
    %53 = arith.addf %50, %52 : vector<8x256xf32>
    %54 = vector.broadcast %18 : vector<1x256xf32> to vector<8x256xf32>
    %55 = arith.addf %53, %54 : vector<8x256xf32>
    %56 = vector.extract_strided_slice %55 {offsets = [0, 0], sizes = [8, 64], strides = [1, 1]} : vector<8x256xf32> to vector<8x64xf32>
    %57 = arith.negf %56 : vector<8x64xf32>
    %58 = math.exp %57 : vector<8x64xf32>
    %cst_28 = arith.constant 1.000000e+00 : f32
    %59 = vector.broadcast %cst_28 : f32 to vector<8x64xf32>
    %60 = arith.addf %59, %58 : vector<8x64xf32>
    %61 = arith.divf %59, %60 : vector<8x64xf32>
    %62 = vector.extract_strided_slice %55 {offsets = [0, 64], sizes = [8, 64], strides = [1, 1]} : vector<8x256xf32> to vector<8x64xf32>
    %63 = arith.negf %62 : vector<8x64xf32>
    %64 = math.exp %63 : vector<8x64xf32>
    %cst_29 = arith.constant 1.000000e+00 : f32
    %65 = vector.broadcast %cst_29 : f32 to vector<8x64xf32>
    %66 = arith.addf %65, %64 : vector<8x64xf32>
    %67 = arith.divf %65, %66 : vector<8x64xf32>
    %68 = vector.extract_strided_slice %55 {offsets = [0, 128], sizes = [8, 64], strides = [1, 1]} : vector<8x256xf32> to vector<8x64xf32>
    %69 = math.tanh %68 : vector<8x64xf32>
    %70 = vector.extract_strided_slice %55 {offsets = [0, 192], sizes = [8, 64], strides = [1, 1]} : vector<8x256xf32> to vector<8x64xf32>
    %71 = arith.negf %70 : vector<8x64xf32>
    %72 = math.exp %71 : vector<8x64xf32>
    %cst_30 = arith.constant 1.000000e+00 : f32
    %73 = vector.broadcast %cst_30 : f32 to vector<8x64xf32>
    %74 = arith.addf %73, %72 : vector<8x64xf32>
    %75 = arith.divf %73, %74 : vector<8x64xf32>
    %76 = arith.mulf %67, %20 : vector<8x64xf32>
    %77 = arith.mulf %61, %69 : vector<8x64xf32>
    %78 = arith.addf %76, %77 : vector<8x64xf32>
    %79 = math.tanh %78 : vector<8x64xf32>
    %80 = arith.mulf %75, %79 : vector<8x64xf32>
    %81 = vector.broadcast %19 : vector<1x64xf32> to vector<8x64xf32>
    %82 = arith.mulf %80, %81 : vector<8x64xf32>
    %cst_31 = arith.constant dense<0.000000e+00> : vector<8xf32>
    %83 = vector.multi_reduction <add>, %82, %cst_31 [1] : vector<8x64xf32> to vector<8xf32>
    %84 = vector.shape_cast %83 : vector<8xf32> to vector<8x1xf32>
    %85 = arith.truncf %48 : vector<8x64xf32> to vector<8x64xbf16>
    %cst_32 = arith.constant dense<0.000000e+00> : vector<8x256xf32>
    %86 = tpu.matmul %85, %15, %cst_32 {dimension_numbers = #tpu.dot_dimension_numbers<[1], [0], [0], [1], [0, 0, 1, 1], [], []>} : vector<8x64xbf16>, vector<64x256xbf16>, vector<8x256xf32> -> vector<8x256xf32>
    %87 = arith.addf %14, %86 : vector<8x256xf32>
    %88 = vector.extract_strided_slice %87 {offsets = [0, 0], sizes = [8, 64], strides = [1, 1]} : vector<8x256xf32> to vector<8x64xf32>
    %89 = arith.negf %88 : vector<8x64xf32>
    %90 = math.exp %89 : vector<8x64xf32>
    %cst_33 = arith.constant 1.000000e+00 : f32
    %91 = vector.broadcast %cst_33 : f32 to vector<8x64xf32>
    %92 = arith.addf %91, %90 : vector<8x64xf32>
    %93 = arith.divf %91, %92 : vector<8x64xf32>
    %94 = vector.extract_strided_slice %87 {offsets = [0, 64], sizes = [8, 64], strides = [1, 1]} : vector<8x256xf32> to vector<8x64xf32>
    %95 = arith.negf %94 : vector<8x64xf32>
    %96 = math.exp %95 : vector<8x64xf32>
    %cst_34 = arith.constant 1.000000e+00 : f32
    %97 = vector.broadcast %cst_34 : f32 to vector<8x64xf32>
    %98 = arith.addf %97, %96 : vector<8x64xf32>
    %99 = arith.divf %97, %98 : vector<8x64xf32>
    %100 = vector.extract_strided_slice %87 {offsets = [0, 128], sizes = [8, 64], strides = [1, 1]} : vector<8x256xf32> to vector<8x64xf32>
    %101 = math.tanh %100 : vector<8x64xf32>
    %102 = vector.extract_strided_slice %87 {offsets = [0, 192], sizes = [8, 64], strides = [1, 1]} : vector<8x256xf32> to vector<8x64xf32>
    %103 = arith.negf %102 : vector<8x64xf32>
    %104 = math.exp %103 : vector<8x64xf32>
    %cst_35 = arith.constant 1.000000e+00 : f32
    %105 = vector.broadcast %cst_35 : f32 to vector<8x64xf32>
    %106 = arith.addf %105, %104 : vector<8x64xf32>
    %107 = arith.divf %105, %106 : vector<8x64xf32>
    %108 = arith.mulf %99, %46 : vector<8x64xf32>
    %109 = arith.mulf %93, %101 : vector<8x64xf32>
    %110 = arith.addf %108, %109 : vector<8x64xf32>
    %111 = math.tanh %110 : vector<8x64xf32>
    %112 = arith.mulf %107, %111 : vector<8x64xf32>
    %113 = arith.truncf %112 : vector<8x64xf32> to vector<8x64xbf16>
    %cst_36 = arith.constant dense<0.000000e+00> : vector<8x256xf32>
    %114 = tpu.matmul %113, %16, %cst_36 {dimension_numbers = #tpu.dot_dimension_numbers<[1], [0], [0], [1], [0, 0, 1, 1], [], []>} : vector<8x64xbf16>, vector<64x256xbf16>, vector<8x256xf32> -> vector<8x256xf32>
    %115 = arith.truncf %80 : vector<8x64xf32> to vector<8x64xbf16>
    %cst_37 = arith.constant dense<0.000000e+00> : vector<8x256xf32>
    %116 = tpu.matmul %115, %17, %cst_37 {dimension_numbers = #tpu.dot_dimension_numbers<[1], [0], [0], [1], [0, 0, 1, 1], [], []>} : vector<8x64xbf16>, vector<64x256xbf16>, vector<8x256xf32> -> vector<8x256xf32>
    %117 = arith.addf %114, %116 : vector<8x256xf32>
    %118 = vector.broadcast %18 : vector<1x256xf32> to vector<8x256xf32>
    %119 = arith.addf %117, %118 : vector<8x256xf32>
    %120 = vector.extract_strided_slice %119 {offsets = [0, 0], sizes = [8, 64], strides = [1, 1]} : vector<8x256xf32> to vector<8x64xf32>
    %121 = arith.negf %120 : vector<8x64xf32>
    %122 = math.exp %121 : vector<8x64xf32>
    %cst_38 = arith.constant 1.000000e+00 : f32
    %123 = vector.broadcast %cst_38 : f32 to vector<8x64xf32>
    %124 = arith.addf %123, %122 : vector<8x64xf32>
    %125 = arith.divf %123, %124 : vector<8x64xf32>
    %126 = vector.extract_strided_slice %119 {offsets = [0, 64], sizes = [8, 64], strides = [1, 1]} : vector<8x256xf32> to vector<8x64xf32>
    %127 = arith.negf %126 : vector<8x64xf32>
    %128 = math.exp %127 : vector<8x64xf32>
    %cst_39 = arith.constant 1.000000e+00 : f32
    %129 = vector.broadcast %cst_39 : f32 to vector<8x64xf32>
    %130 = arith.addf %129, %128 : vector<8x64xf32>
    %131 = arith.divf %129, %130 : vector<8x64xf32>
    %132 = vector.extract_strided_slice %119 {offsets = [0, 128], sizes = [8, 64], strides = [1, 1]} : vector<8x256xf32> to vector<8x64xf32>
    %133 = math.tanh %132 : vector<8x64xf32>
    %134 = vector.extract_strided_slice %119 {offsets = [0, 192], sizes = [8, 64], strides = [1, 1]} : vector<8x256xf32> to vector<8x64xf32>
    %135 = arith.negf %134 : vector<8x64xf32>
    %136 = math.exp %135 : vector<8x64xf32>
    %cst_40 = arith.constant 1.000000e+00 : f32
    %137 = vector.broadcast %cst_40 : f32 to vector<8x64xf32>
    %138 = arith.addf %137, %136 : vector<8x64xf32>
    %139 = arith.divf %137, %138 : vector<8x64xf32>
    %140 = arith.mulf %131, %78 : vector<8x64xf32>
    %141 = arith.mulf %125, %133 : vector<8x64xf32>
    %142 = arith.addf %140, %141 : vector<8x64xf32>
    %143 = math.tanh %142 : vector<8x64xf32>
    %144 = arith.mulf %139, %143 : vector<8x64xf32>
    %145 = vector.broadcast %19 : vector<1x64xf32> to vector<8x64xf32>
    %146 = arith.mulf %144, %145 : vector<8x64xf32>
    %cst_41 = arith.constant dense<0.000000e+00> : vector<8xf32>
    %147 = vector.multi_reduction <add>, %146, %cst_41 [1] : vector<8x64xf32> to vector<8xf32>
    %148 = vector.shape_cast %147 : vector<8xf32> to vector<8x1xf32>
    %149 = arith.truncf %112 : vector<8x64xf32> to vector<8x64xbf16>
    %cst_42 = arith.constant dense<0.000000e+00> : vector<8x256xf32>
    %150 = tpu.matmul %149, %15, %cst_42 {dimension_numbers = #tpu.dot_dimension_numbers<[1], [0], [0], [1], [0, 0, 1, 1], [], []>} : vector<8x64xbf16>, vector<64x256xbf16>, vector<8x256xf32> -> vector<8x256xf32>
    %151 = arith.addf %14, %150 : vector<8x256xf32>
    %152 = vector.extract_strided_slice %151 {offsets = [0, 0], sizes = [8, 64], strides = [1, 1]} : vector<8x256xf32> to vector<8x64xf32>
    %153 = arith.negf %152 : vector<8x64xf32>
    %154 = math.exp %153 : vector<8x64xf32>
    %cst_43 = arith.constant 1.000000e+00 : f32
    %155 = vector.broadcast %cst_43 : f32 to vector<8x64xf32>
    %156 = arith.addf %155, %154 : vector<8x64xf32>
    %157 = arith.divf %155, %156 : vector<8x64xf32>
    %158 = vector.extract_strided_slice %151 {offsets = [0, 64], sizes = [8, 64], strides = [1, 1]} : vector<8x256xf32> to vector<8x64xf32>
    %159 = arith.negf %158 : vector<8x64xf32>
    %160 = math.exp %159 : vector<8x64xf32>
    %cst_44 = arith.constant 1.000000e+00 : f32
    %161 = vector.broadcast %cst_44 : f32 to vector<8x64xf32>
    %162 = arith.addf %161, %160 : vector<8x64xf32>
    %163 = arith.divf %161, %162 : vector<8x64xf32>
    %164 = vector.extract_strided_slice %151 {offsets = [0, 128], sizes = [8, 64], strides = [1, 1]} : vector<8x256xf32> to vector<8x64xf32>
    %165 = math.tanh %164 : vector<8x64xf32>
    %166 = vector.extract_strided_slice %151 {offsets = [0, 192], sizes = [8, 64], strides = [1, 1]} : vector<8x256xf32> to vector<8x64xf32>
    %167 = arith.negf %166 : vector<8x64xf32>
    %168 = math.exp %167 : vector<8x64xf32>
    %cst_45 = arith.constant 1.000000e+00 : f32
    %169 = vector.broadcast %cst_45 : f32 to vector<8x64xf32>
    %170 = arith.addf %169, %168 : vector<8x64xf32>
    %171 = arith.divf %169, %170 : vector<8x64xf32>
    %172 = arith.mulf %163, %110 : vector<8x64xf32>
    %173 = arith.mulf %157, %165 : vector<8x64xf32>
    %174 = arith.addf %172, %173 : vector<8x64xf32>
    %175 = math.tanh %174 : vector<8x64xf32>
    %176 = arith.mulf %171, %175 : vector<8x64xf32>
    %177 = arith.truncf %176 : vector<8x64xf32> to vector<8x64xbf16>
    %cst_46 = arith.constant dense<0.000000e+00> : vector<8x256xf32>
    %178 = tpu.matmul %177, %16, %cst_46 {dimension_numbers = #tpu.dot_dimension_numbers<[1], [0], [0], [1], [0, 0, 1, 1], [], []>} : vector<8x64xbf16>, vector<64x256xbf16>, vector<8x256xf32> -> vector<8x256xf32>
    %179 = arith.truncf %144 : vector<8x64xf32> to vector<8x64xbf16>
    %cst_47 = arith.constant dense<0.000000e+00> : vector<8x256xf32>
    %180 = tpu.matmul %179, %17, %cst_47 {dimension_numbers = #tpu.dot_dimension_numbers<[1], [0], [0], [1], [0, 0, 1, 1], [], []>} : vector<8x64xbf16>, vector<64x256xbf16>, vector<8x256xf32> -> vector<8x256xf32>
    %181 = arith.addf %178, %180 : vector<8x256xf32>
    %182 = vector.broadcast %18 : vector<1x256xf32> to vector<8x256xf32>
    %183 = arith.addf %181, %182 : vector<8x256xf32>
    %184 = vector.extract_strided_slice %183 {offsets = [0, 0], sizes = [8, 64], strides = [1, 1]} : vector<8x256xf32> to vector<8x64xf32>
    %185 = arith.negf %184 : vector<8x64xf32>
    %186 = math.exp %185 : vector<8x64xf32>
    %cst_48 = arith.constant 1.000000e+00 : f32
    %187 = vector.broadcast %cst_48 : f32 to vector<8x64xf32>
    %188 = arith.addf %187, %186 : vector<8x64xf32>
    %189 = arith.divf %187, %188 : vector<8x64xf32>
    %190 = vector.extract_strided_slice %183 {offsets = [0, 64], sizes = [8, 64], strides = [1, 1]} : vector<8x256xf32> to vector<8x64xf32>
    %191 = arith.negf %190 : vector<8x64xf32>
    %192 = math.exp %191 : vector<8x64xf32>
    %cst_49 = arith.constant 1.000000e+00 : f32
    %193 = vector.broadcast %cst_49 : f32 to vector<8x64xf32>
    %194 = arith.addf %193, %192 : vector<8x64xf32>
    %195 = arith.divf %193, %194 : vector<8x64xf32>
    %196 = vector.extract_strided_slice %183 {offsets = [0, 128], sizes = [8, 64], strides = [1, 1]} : vector<8x256xf32> to vector<8x64xf32>
    %197 = math.tanh %196 : vector<8x64xf32>
    %198 = vector.extract_strided_slice %183 {offsets = [0, 192], sizes = [8, 64], strides = [1, 1]} : vector<8x256xf32> to vector<8x64xf32>
    %199 = arith.negf %198 : vector<8x64xf32>
    %200 = math.exp %199 : vector<8x64xf32>
    %cst_50 = arith.constant 1.000000e+00 : f32
    %201 = vector.broadcast %cst_50 : f32 to vector<8x64xf32>
    %202 = arith.addf %201, %200 : vector<8x64xf32>
    %203 = arith.divf %201, %202 : vector<8x64xf32>
    %204 = arith.mulf %195, %142 : vector<8x64xf32>
    %205 = arith.mulf %189, %197 : vector<8x64xf32>
    %206 = arith.addf %204, %205 : vector<8x64xf32>
    %207 = math.tanh %206 : vector<8x64xf32>
    %208 = arith.mulf %203, %207 : vector<8x64xf32>
    %209 = vector.broadcast %19 : vector<1x64xf32> to vector<8x64xf32>
    %210 = arith.mulf %208, %209 : vector<8x64xf32>
    %cst_51 = arith.constant dense<0.000000e+00> : vector<8xf32>
    %211 = vector.multi_reduction <add>, %210, %cst_51 [1] : vector<8x64xf32> to vector<8xf32>
    %212 = vector.shape_cast %211 : vector<8xf32> to vector<8x1xf32>
    %213 = arith.truncf %176 : vector<8x64xf32> to vector<8x64xbf16>
    %cst_52 = arith.constant dense<0.000000e+00> : vector<8x256xf32>
    %214 = tpu.matmul %213, %15, %cst_52 {dimension_numbers = #tpu.dot_dimension_numbers<[1], [0], [0], [1], [0, 0, 1, 1], [], []>} : vector<8x64xbf16>, vector<64x256xbf16>, vector<8x256xf32> -> vector<8x256xf32>
    %215 = arith.addf %14, %214 : vector<8x256xf32>
    %216 = vector.extract_strided_slice %215 {offsets = [0, 0], sizes = [8, 64], strides = [1, 1]} : vector<8x256xf32> to vector<8x64xf32>
    %217 = arith.negf %216 : vector<8x64xf32>
    %218 = math.exp %217 : vector<8x64xf32>
    %cst_53 = arith.constant 1.000000e+00 : f32
    %219 = vector.broadcast %cst_53 : f32 to vector<8x64xf32>
    %220 = arith.addf %219, %218 : vector<8x64xf32>
    %221 = arith.divf %219, %220 : vector<8x64xf32>
    %222 = vector.extract_strided_slice %215 {offsets = [0, 64], sizes = [8, 64], strides = [1, 1]} : vector<8x256xf32> to vector<8x64xf32>
    %223 = arith.negf %222 : vector<8x64xf32>
    %224 = math.exp %223 : vector<8x64xf32>
    %cst_54 = arith.constant 1.000000e+00 : f32
    %225 = vector.broadcast %cst_54 : f32 to vector<8x64xf32>
    %226 = arith.addf %225, %224 : vector<8x64xf32>
    %227 = arith.divf %225, %226 : vector<8x64xf32>
    %228 = vector.extract_strided_slice %215 {offsets = [0, 128], sizes = [8, 64], strides = [1, 1]} : vector<8x256xf32> to vector<8x64xf32>
    %229 = math.tanh %228 : vector<8x64xf32>
    %230 = vector.extract_strided_slice %215 {offsets = [0, 192], sizes = [8, 64], strides = [1, 1]} : vector<8x256xf32> to vector<8x64xf32>
    %231 = arith.negf %230 : vector<8x64xf32>
    %232 = math.exp %231 : vector<8x64xf32>
    %cst_55 = arith.constant 1.000000e+00 : f32
    %233 = vector.broadcast %cst_55 : f32 to vector<8x64xf32>
    %234 = arith.addf %233, %232 : vector<8x64xf32>
    %235 = arith.divf %233, %234 : vector<8x64xf32>
    %236 = arith.mulf %227, %174 : vector<8x64xf32>
    %237 = arith.mulf %221, %229 : vector<8x64xf32>
    %238 = arith.addf %236, %237 : vector<8x64xf32>
    %239 = math.tanh %238 : vector<8x64xf32>
    %240 = arith.mulf %235, %239 : vector<8x64xf32>
    %241 = arith.truncf %240 : vector<8x64xf32> to vector<8x64xbf16>
    %cst_56 = arith.constant dense<0.000000e+00> : vector<8x256xf32>
    %242 = tpu.matmul %241, %16, %cst_56 {dimension_numbers = #tpu.dot_dimension_numbers<[1], [0], [0], [1], [0, 0, 1, 1], [], []>} : vector<8x64xbf16>, vector<64x256xbf16>, vector<8x256xf32> -> vector<8x256xf32>
    %243 = arith.truncf %208 : vector<8x64xf32> to vector<8x64xbf16>
    %cst_57 = arith.constant dense<0.000000e+00> : vector<8x256xf32>
    %244 = tpu.matmul %243, %17, %cst_57 {dimension_numbers = #tpu.dot_dimension_numbers<[1], [0], [0], [1], [0, 0, 1, 1], [], []>} : vector<8x64xbf16>, vector<64x256xbf16>, vector<8x256xf32> -> vector<8x256xf32>
    %245 = arith.addf %242, %244 : vector<8x256xf32>
    %246 = vector.broadcast %18 : vector<1x256xf32> to vector<8x256xf32>
    %247 = arith.addf %245, %246 : vector<8x256xf32>
    %248 = vector.extract_strided_slice %247 {offsets = [0, 0], sizes = [8, 64], strides = [1, 1]} : vector<8x256xf32> to vector<8x64xf32>
    %249 = arith.negf %248 : vector<8x64xf32>
    %250 = math.exp %249 : vector<8x64xf32>
    %cst_58 = arith.constant 1.000000e+00 : f32
    %251 = vector.broadcast %cst_58 : f32 to vector<8x64xf32>
    %252 = arith.addf %251, %250 : vector<8x64xf32>
    %253 = arith.divf %251, %252 : vector<8x64xf32>
    %254 = vector.extract_strided_slice %247 {offsets = [0, 64], sizes = [8, 64], strides = [1, 1]} : vector<8x256xf32> to vector<8x64xf32>
    %255 = arith.negf %254 : vector<8x64xf32>
    %256 = math.exp %255 : vector<8x64xf32>
    %cst_59 = arith.constant 1.000000e+00 : f32
    %257 = vector.broadcast %cst_59 : f32 to vector<8x64xf32>
    %258 = arith.addf %257, %256 : vector<8x64xf32>
    %259 = arith.divf %257, %258 : vector<8x64xf32>
    %260 = vector.extract_strided_slice %247 {offsets = [0, 128], sizes = [8, 64], strides = [1, 1]} : vector<8x256xf32> to vector<8x64xf32>
    %261 = math.tanh %260 : vector<8x64xf32>
    %262 = vector.extract_strided_slice %247 {offsets = [0, 192], sizes = [8, 64], strides = [1, 1]} : vector<8x256xf32> to vector<8x64xf32>
    %263 = arith.negf %262 : vector<8x64xf32>
    %264 = math.exp %263 : vector<8x64xf32>
    %cst_60 = arith.constant 1.000000e+00 : f32
    %265 = vector.broadcast %cst_60 : f32 to vector<8x64xf32>
    %266 = arith.addf %265, %264 : vector<8x64xf32>
    %267 = arith.divf %265, %266 : vector<8x64xf32>
    %268 = arith.mulf %259, %206 : vector<8x64xf32>
    %269 = arith.mulf %253, %261 : vector<8x64xf32>
    %270 = arith.addf %268, %269 : vector<8x64xf32>
    %271 = math.tanh %270 : vector<8x64xf32>
    %272 = arith.mulf %267, %271 : vector<8x64xf32>
    %273 = vector.broadcast %19 : vector<1x64xf32> to vector<8x64xf32>
    %274 = arith.mulf %272, %273 : vector<8x64xf32>
    %cst_61 = arith.constant dense<0.000000e+00> : vector<8xf32>
    %275 = vector.multi_reduction <add>, %274, %cst_61 [1] : vector<8x64xf32> to vector<8xf32>
    %276 = vector.shape_cast %275 : vector<8xf32> to vector<8x1xf32>
    %277 = arith.truncf %240 : vector<8x64xf32> to vector<8x64xbf16>
    %cst_62 = arith.constant dense<0.000000e+00> : vector<8x256xf32>
    %278 = tpu.matmul %277, %15, %cst_62 {dimension_numbers = #tpu.dot_dimension_numbers<[1], [0], [0], [1], [0, 0, 1, 1], [], []>} : vector<8x64xbf16>, vector<64x256xbf16>, vector<8x256xf32> -> vector<8x256xf32>
    %279 = arith.addf %14, %278 : vector<8x256xf32>
    %280 = vector.extract_strided_slice %279 {offsets = [0, 0], sizes = [8, 64], strides = [1, 1]} : vector<8x256xf32> to vector<8x64xf32>
    %281 = arith.negf %280 : vector<8x64xf32>
    %282 = math.exp %281 : vector<8x64xf32>
    %cst_63 = arith.constant 1.000000e+00 : f32
    %283 = vector.broadcast %cst_63 : f32 to vector<8x64xf32>
    %284 = arith.addf %283, %282 : vector<8x64xf32>
    %285 = arith.divf %283, %284 : vector<8x64xf32>
    %286 = vector.extract_strided_slice %279 {offsets = [0, 64], sizes = [8, 64], strides = [1, 1]} : vector<8x256xf32> to vector<8x64xf32>
    %287 = arith.negf %286 : vector<8x64xf32>
    %288 = math.exp %287 : vector<8x64xf32>
    %cst_64 = arith.constant 1.000000e+00 : f32
    %289 = vector.broadcast %cst_64 : f32 to vector<8x64xf32>
    %290 = arith.addf %289, %288 : vector<8x64xf32>
    %291 = arith.divf %289, %290 : vector<8x64xf32>
    %292 = vector.extract_strided_slice %279 {offsets = [0, 128], sizes = [8, 64], strides = [1, 1]} : vector<8x256xf32> to vector<8x64xf32>
    %293 = math.tanh %292 : vector<8x64xf32>
    %294 = vector.extract_strided_slice %279 {offsets = [0, 192], sizes = [8, 64], strides = [1, 1]} : vector<8x256xf32> to vector<8x64xf32>
    %295 = arith.negf %294 : vector<8x64xf32>
    %296 = math.exp %295 : vector<8x64xf32>
    %cst_65 = arith.constant 1.000000e+00 : f32
    %297 = vector.broadcast %cst_65 : f32 to vector<8x64xf32>
    %298 = arith.addf %297, %296 : vector<8x64xf32>
    %299 = arith.divf %297, %298 : vector<8x64xf32>
    %300 = arith.mulf %291, %238 : vector<8x64xf32>
    %301 = arith.mulf %285, %293 : vector<8x64xf32>
    %302 = arith.addf %300, %301 : vector<8x64xf32>
    %303 = math.tanh %302 : vector<8x64xf32>
    %304 = arith.mulf %299, %303 : vector<8x64xf32>
    %305 = arith.truncf %304 : vector<8x64xf32> to vector<8x64xbf16>
    %cst_66 = arith.constant dense<0.000000e+00> : vector<8x256xf32>
    %306 = tpu.matmul %305, %16, %cst_66 {dimension_numbers = #tpu.dot_dimension_numbers<[1], [0], [0], [1], [0, 0, 1, 1], [], []>} : vector<8x64xbf16>, vector<64x256xbf16>, vector<8x256xf32> -> vector<8x256xf32>
    %307 = arith.truncf %272 : vector<8x64xf32> to vector<8x64xbf16>
    %cst_67 = arith.constant dense<0.000000e+00> : vector<8x256xf32>
    %308 = tpu.matmul %307, %17, %cst_67 {dimension_numbers = #tpu.dot_dimension_numbers<[1], [0], [0], [1], [0, 0, 1, 1], [], []>} : vector<8x64xbf16>, vector<64x256xbf16>, vector<8x256xf32> -> vector<8x256xf32>
    %309 = arith.addf %306, %308 : vector<8x256xf32>
    %310 = vector.broadcast %18 : vector<1x256xf32> to vector<8x256xf32>
    %311 = arith.addf %309, %310 : vector<8x256xf32>
    %312 = vector.extract_strided_slice %311 {offsets = [0, 0], sizes = [8, 64], strides = [1, 1]} : vector<8x256xf32> to vector<8x64xf32>
    %313 = arith.negf %312 : vector<8x64xf32>
    %314 = math.exp %313 : vector<8x64xf32>
    %cst_68 = arith.constant 1.000000e+00 : f32
    %315 = vector.broadcast %cst_68 : f32 to vector<8x64xf32>
    %316 = arith.addf %315, %314 : vector<8x64xf32>
    %317 = arith.divf %315, %316 : vector<8x64xf32>
    %318 = vector.extract_strided_slice %311 {offsets = [0, 64], sizes = [8, 64], strides = [1, 1]} : vector<8x256xf32> to vector<8x64xf32>
    %319 = arith.negf %318 : vector<8x64xf32>
    %320 = math.exp %319 : vector<8x64xf32>
    %cst_69 = arith.constant 1.000000e+00 : f32
    %321 = vector.broadcast %cst_69 : f32 to vector<8x64xf32>
    %322 = arith.addf %321, %320 : vector<8x64xf32>
    %323 = arith.divf %321, %322 : vector<8x64xf32>
    %324 = vector.extract_strided_slice %311 {offsets = [0, 128], sizes = [8, 64], strides = [1, 1]} : vector<8x256xf32> to vector<8x64xf32>
    %325 = math.tanh %324 : vector<8x64xf32>
    %326 = vector.extract_strided_slice %311 {offsets = [0, 192], sizes = [8, 64], strides = [1, 1]} : vector<8x256xf32> to vector<8x64xf32>
    %327 = arith.negf %326 : vector<8x64xf32>
    %328 = math.exp %327 : vector<8x64xf32>
    %cst_70 = arith.constant 1.000000e+00 : f32
    %329 = vector.broadcast %cst_70 : f32 to vector<8x64xf32>
    %330 = arith.addf %329, %328 : vector<8x64xf32>
    %331 = arith.divf %329, %330 : vector<8x64xf32>
    %332 = arith.mulf %323, %270 : vector<8x64xf32>
    %333 = arith.mulf %317, %325 : vector<8x64xf32>
    %334 = arith.addf %332, %333 : vector<8x64xf32>
    %335 = math.tanh %334 : vector<8x64xf32>
    %336 = arith.mulf %331, %335 : vector<8x64xf32>
    %337 = vector.broadcast %19 : vector<1x64xf32> to vector<8x64xf32>
    %338 = arith.mulf %336, %337 : vector<8x64xf32>
    %cst_71 = arith.constant dense<0.000000e+00> : vector<8xf32>
    %339 = vector.multi_reduction <add>, %338, %cst_71 [1] : vector<8x64xf32> to vector<8xf32>
    %340 = vector.shape_cast %339 : vector<8xf32> to vector<8x1xf32>
    %341 = arith.truncf %304 : vector<8x64xf32> to vector<8x64xbf16>
    %cst_72 = arith.constant dense<0.000000e+00> : vector<8x256xf32>
    %342 = tpu.matmul %341, %15, %cst_72 {dimension_numbers = #tpu.dot_dimension_numbers<[1], [0], [0], [1], [0, 0, 1, 1], [], []>} : vector<8x64xbf16>, vector<64x256xbf16>, vector<8x256xf32> -> vector<8x256xf32>
    %343 = arith.addf %14, %342 : vector<8x256xf32>
    %344 = vector.extract_strided_slice %343 {offsets = [0, 0], sizes = [8, 64], strides = [1, 1]} : vector<8x256xf32> to vector<8x64xf32>
    %345 = arith.negf %344 : vector<8x64xf32>
    %346 = math.exp %345 : vector<8x64xf32>
    %cst_73 = arith.constant 1.000000e+00 : f32
    %347 = vector.broadcast %cst_73 : f32 to vector<8x64xf32>
    %348 = arith.addf %347, %346 : vector<8x64xf32>
    %349 = arith.divf %347, %348 : vector<8x64xf32>
    %350 = vector.extract_strided_slice %343 {offsets = [0, 64], sizes = [8, 64], strides = [1, 1]} : vector<8x256xf32> to vector<8x64xf32>
    %351 = arith.negf %350 : vector<8x64xf32>
    %352 = math.exp %351 : vector<8x64xf32>
    %cst_74 = arith.constant 1.000000e+00 : f32
    %353 = vector.broadcast %cst_74 : f32 to vector<8x64xf32>
    %354 = arith.addf %353, %352 : vector<8x64xf32>
    %355 = arith.divf %353, %354 : vector<8x64xf32>
    %356 = vector.extract_strided_slice %343 {offsets = [0, 128], sizes = [8, 64], strides = [1, 1]} : vector<8x256xf32> to vector<8x64xf32>
    %357 = math.tanh %356 : vector<8x64xf32>
    %358 = vector.extract_strided_slice %343 {offsets = [0, 192], sizes = [8, 64], strides = [1, 1]} : vector<8x256xf32> to vector<8x64xf32>
    %359 = arith.negf %358 : vector<8x64xf32>
    %360 = math.exp %359 : vector<8x64xf32>
    %cst_75 = arith.constant 1.000000e+00 : f32
    %361 = vector.broadcast %cst_75 : f32 to vector<8x64xf32>
    %362 = arith.addf %361, %360 : vector<8x64xf32>
    %363 = arith.divf %361, %362 : vector<8x64xf32>
    %364 = arith.mulf %355, %302 : vector<8x64xf32>
    %365 = arith.mulf %349, %357 : vector<8x64xf32>
    %366 = arith.addf %364, %365 : vector<8x64xf32>
    %367 = math.tanh %366 : vector<8x64xf32>
    %368 = arith.mulf %363, %367 : vector<8x64xf32>
    %369 = arith.truncf %368 : vector<8x64xf32> to vector<8x64xbf16>
    %cst_76 = arith.constant dense<0.000000e+00> : vector<8x256xf32>
    %370 = tpu.matmul %369, %16, %cst_76 {dimension_numbers = #tpu.dot_dimension_numbers<[1], [0], [0], [1], [0, 0, 1, 1], [], []>} : vector<8x64xbf16>, vector<64x256xbf16>, vector<8x256xf32> -> vector<8x256xf32>
    %371 = arith.truncf %336 : vector<8x64xf32> to vector<8x64xbf16>
    %cst_77 = arith.constant dense<0.000000e+00> : vector<8x256xf32>
    %372 = tpu.matmul %371, %17, %cst_77 {dimension_numbers = #tpu.dot_dimension_numbers<[1], [0], [0], [1], [0, 0, 1, 1], [], []>} : vector<8x64xbf16>, vector<64x256xbf16>, vector<8x256xf32> -> vector<8x256xf32>
    %373 = arith.addf %370, %372 : vector<8x256xf32>
    %374 = vector.broadcast %18 : vector<1x256xf32> to vector<8x256xf32>
    %375 = arith.addf %373, %374 : vector<8x256xf32>
    %376 = vector.extract_strided_slice %375 {offsets = [0, 0], sizes = [8, 64], strides = [1, 1]} : vector<8x256xf32> to vector<8x64xf32>
    %377 = arith.negf %376 : vector<8x64xf32>
    %378 = math.exp %377 : vector<8x64xf32>
    %cst_78 = arith.constant 1.000000e+00 : f32
    %379 = vector.broadcast %cst_78 : f32 to vector<8x64xf32>
    %380 = arith.addf %379, %378 : vector<8x64xf32>
    %381 = arith.divf %379, %380 : vector<8x64xf32>
    %382 = vector.extract_strided_slice %375 {offsets = [0, 64], sizes = [8, 64], strides = [1, 1]} : vector<8x256xf32> to vector<8x64xf32>
    %383 = arith.negf %382 : vector<8x64xf32>
    %384 = math.exp %383 : vector<8x64xf32>
    %cst_79 = arith.constant 1.000000e+00 : f32
    %385 = vector.broadcast %cst_79 : f32 to vector<8x64xf32>
    %386 = arith.addf %385, %384 : vector<8x64xf32>
    %387 = arith.divf %385, %386 : vector<8x64xf32>
    %388 = vector.extract_strided_slice %375 {offsets = [0, 128], sizes = [8, 64], strides = [1, 1]} : vector<8x256xf32> to vector<8x64xf32>
    %389 = math.tanh %388 : vector<8x64xf32>
    %390 = vector.extract_strided_slice %375 {offsets = [0, 192], sizes = [8, 64], strides = [1, 1]} : vector<8x256xf32> to vector<8x64xf32>
    %391 = arith.negf %390 : vector<8x64xf32>
    %392 = math.exp %391 : vector<8x64xf32>
    %cst_80 = arith.constant 1.000000e+00 : f32
    %393 = vector.broadcast %cst_80 : f32 to vector<8x64xf32>
    %394 = arith.addf %393, %392 : vector<8x64xf32>
    %395 = arith.divf %393, %394 : vector<8x64xf32>
    %396 = arith.mulf %387, %334 : vector<8x64xf32>
    %397 = arith.mulf %381, %389 : vector<8x64xf32>
    %398 = arith.addf %396, %397 : vector<8x64xf32>
    %399 = math.tanh %398 : vector<8x64xf32>
    %400 = arith.mulf %395, %399 : vector<8x64xf32>
    %401 = vector.broadcast %19 : vector<1x64xf32> to vector<8x64xf32>
    %402 = arith.mulf %400, %401 : vector<8x64xf32>
    %cst_81 = arith.constant dense<0.000000e+00> : vector<8xf32>
    %403 = vector.multi_reduction <add>, %402, %cst_81 [1] : vector<8x64xf32> to vector<8xf32>
    %404 = vector.shape_cast %403 : vector<8xf32> to vector<8x1xf32>
    %405 = arith.truncf %368 : vector<8x64xf32> to vector<8x64xbf16>
    %cst_82 = arith.constant dense<0.000000e+00> : vector<8x256xf32>
    %406 = tpu.matmul %405, %15, %cst_82 {dimension_numbers = #tpu.dot_dimension_numbers<[1], [0], [0], [1], [0, 0, 1, 1], [], []>} : vector<8x64xbf16>, vector<64x256xbf16>, vector<8x256xf32> -> vector<8x256xf32>
    %407 = arith.addf %14, %406 : vector<8x256xf32>
    %408 = vector.extract_strided_slice %407 {offsets = [0, 0], sizes = [8, 64], strides = [1, 1]} : vector<8x256xf32> to vector<8x64xf32>
    %409 = arith.negf %408 : vector<8x64xf32>
    %410 = math.exp %409 : vector<8x64xf32>
    %cst_83 = arith.constant 1.000000e+00 : f32
    %411 = vector.broadcast %cst_83 : f32 to vector<8x64xf32>
    %412 = arith.addf %411, %410 : vector<8x64xf32>
    %413 = arith.divf %411, %412 : vector<8x64xf32>
    %414 = vector.extract_strided_slice %407 {offsets = [0, 64], sizes = [8, 64], strides = [1, 1]} : vector<8x256xf32> to vector<8x64xf32>
    %415 = arith.negf %414 : vector<8x64xf32>
    %416 = math.exp %415 : vector<8x64xf32>
    %cst_84 = arith.constant 1.000000e+00 : f32
    %417 = vector.broadcast %cst_84 : f32 to vector<8x64xf32>
    %418 = arith.addf %417, %416 : vector<8x64xf32>
    %419 = arith.divf %417, %418 : vector<8x64xf32>
    %420 = vector.extract_strided_slice %407 {offsets = [0, 128], sizes = [8, 64], strides = [1, 1]} : vector<8x256xf32> to vector<8x64xf32>
    %421 = math.tanh %420 : vector<8x64xf32>
    %422 = vector.extract_strided_slice %407 {offsets = [0, 192], sizes = [8, 64], strides = [1, 1]} : vector<8x256xf32> to vector<8x64xf32>
    %423 = arith.negf %422 : vector<8x64xf32>
    %424 = math.exp %423 : vector<8x64xf32>
    %cst_85 = arith.constant 1.000000e+00 : f32
    %425 = vector.broadcast %cst_85 : f32 to vector<8x64xf32>
    %426 = arith.addf %425, %424 : vector<8x64xf32>
    %427 = arith.divf %425, %426 : vector<8x64xf32>
    %428 = arith.mulf %419, %366 : vector<8x64xf32>
    %429 = arith.mulf %413, %421 : vector<8x64xf32>
    %430 = arith.addf %428, %429 : vector<8x64xf32>
    %431 = math.tanh %430 : vector<8x64xf32>
    %432 = arith.mulf %427, %431 : vector<8x64xf32>
    %433 = arith.truncf %432 : vector<8x64xf32> to vector<8x64xbf16>
    %cst_86 = arith.constant dense<0.000000e+00> : vector<8x256xf32>
    %434 = tpu.matmul %433, %16, %cst_86 {dimension_numbers = #tpu.dot_dimension_numbers<[1], [0], [0], [1], [0, 0, 1, 1], [], []>} : vector<8x64xbf16>, vector<64x256xbf16>, vector<8x256xf32> -> vector<8x256xf32>
    %435 = arith.truncf %400 : vector<8x64xf32> to vector<8x64xbf16>
    %cst_87 = arith.constant dense<0.000000e+00> : vector<8x256xf32>
    %436 = tpu.matmul %435, %17, %cst_87 {dimension_numbers = #tpu.dot_dimension_numbers<[1], [0], [0], [1], [0, 0, 1, 1], [], []>} : vector<8x64xbf16>, vector<64x256xbf16>, vector<8x256xf32> -> vector<8x256xf32>
    %437 = arith.addf %434, %436 : vector<8x256xf32>
    %438 = vector.broadcast %18 : vector<1x256xf32> to vector<8x256xf32>
    %439 = arith.addf %437, %438 : vector<8x256xf32>
    %440 = vector.extract_strided_slice %439 {offsets = [0, 0], sizes = [8, 64], strides = [1, 1]} : vector<8x256xf32> to vector<8x64xf32>
    %441 = arith.negf %440 : vector<8x64xf32>
    %442 = math.exp %441 : vector<8x64xf32>
    %cst_88 = arith.constant 1.000000e+00 : f32
    %443 = vector.broadcast %cst_88 : f32 to vector<8x64xf32>
    %444 = arith.addf %443, %442 : vector<8x64xf32>
    %445 = arith.divf %443, %444 : vector<8x64xf32>
    %446 = vector.extract_strided_slice %439 {offsets = [0, 64], sizes = [8, 64], strides = [1, 1]} : vector<8x256xf32> to vector<8x64xf32>
    %447 = arith.negf %446 : vector<8x64xf32>
    %448 = math.exp %447 : vector<8x64xf32>
    %cst_89 = arith.constant 1.000000e+00 : f32
    %449 = vector.broadcast %cst_89 : f32 to vector<8x64xf32>
    %450 = arith.addf %449, %448 : vector<8x64xf32>
    %451 = arith.divf %449, %450 : vector<8x64xf32>
    %452 = vector.extract_strided_slice %439 {offsets = [0, 128], sizes = [8, 64], strides = [1, 1]} : vector<8x256xf32> to vector<8x64xf32>
    %453 = math.tanh %452 : vector<8x64xf32>
    %454 = vector.extract_strided_slice %439 {offsets = [0, 192], sizes = [8, 64], strides = [1, 1]} : vector<8x256xf32> to vector<8x64xf32>
    %455 = arith.negf %454 : vector<8x64xf32>
    %456 = math.exp %455 : vector<8x64xf32>
    %cst_90 = arith.constant 1.000000e+00 : f32
    %457 = vector.broadcast %cst_90 : f32 to vector<8x64xf32>
    %458 = arith.addf %457, %456 : vector<8x64xf32>
    %459 = arith.divf %457, %458 : vector<8x64xf32>
    %460 = arith.mulf %451, %398 : vector<8x64xf32>
    %461 = arith.mulf %445, %453 : vector<8x64xf32>
    %462 = arith.addf %460, %461 : vector<8x64xf32>
    %463 = math.tanh %462 : vector<8x64xf32>
    %464 = arith.mulf %459, %463 : vector<8x64xf32>
    %465 = vector.broadcast %19 : vector<1x64xf32> to vector<8x64xf32>
    %466 = arith.mulf %464, %465 : vector<8x64xf32>
    %cst_91 = arith.constant dense<0.000000e+00> : vector<8xf32>
    %467 = vector.multi_reduction <add>, %466, %cst_91 [1] : vector<8x64xf32> to vector<8xf32>
    %468 = vector.shape_cast %467 : vector<8xf32> to vector<8x1xf32>
    %469 = arith.truncf %432 : vector<8x64xf32> to vector<8x64xbf16>
    %cst_92 = arith.constant dense<0.000000e+00> : vector<8x256xf32>
    %470 = tpu.matmul %469, %15, %cst_92 {dimension_numbers = #tpu.dot_dimension_numbers<[1], [0], [0], [1], [0, 0, 1, 1], [], []>} : vector<8x64xbf16>, vector<64x256xbf16>, vector<8x256xf32> -> vector<8x256xf32>
    %471 = arith.addf %14, %470 : vector<8x256xf32>
    %472 = vector.extract_strided_slice %471 {offsets = [0, 0], sizes = [8, 64], strides = [1, 1]} : vector<8x256xf32> to vector<8x64xf32>
    %473 = arith.negf %472 : vector<8x64xf32>
    %474 = math.exp %473 : vector<8x64xf32>
    %cst_93 = arith.constant 1.000000e+00 : f32
    %475 = vector.broadcast %cst_93 : f32 to vector<8x64xf32>
    %476 = arith.addf %475, %474 : vector<8x64xf32>
    %477 = arith.divf %475, %476 : vector<8x64xf32>
    %478 = vector.extract_strided_slice %471 {offsets = [0, 64], sizes = [8, 64], strides = [1, 1]} : vector<8x256xf32> to vector<8x64xf32>
    %479 = arith.negf %478 : vector<8x64xf32>
    %480 = math.exp %479 : vector<8x64xf32>
    %cst_94 = arith.constant 1.000000e+00 : f32
    %481 = vector.broadcast %cst_94 : f32 to vector<8x64xf32>
    %482 = arith.addf %481, %480 : vector<8x64xf32>
    %483 = arith.divf %481, %482 : vector<8x64xf32>
    %484 = vector.extract_strided_slice %471 {offsets = [0, 128], sizes = [8, 64], strides = [1, 1]} : vector<8x256xf32> to vector<8x64xf32>
    %485 = math.tanh %484 : vector<8x64xf32>
    %486 = vector.extract_strided_slice %471 {offsets = [0, 192], sizes = [8, 64], strides = [1, 1]} : vector<8x256xf32> to vector<8x64xf32>
    %487 = arith.negf %486 : vector<8x64xf32>
    %488 = math.exp %487 : vector<8x64xf32>
    %cst_95 = arith.constant 1.000000e+00 : f32
    %489 = vector.broadcast %cst_95 : f32 to vector<8x64xf32>
    %490 = arith.addf %489, %488 : vector<8x64xf32>
    %491 = arith.divf %489, %490 : vector<8x64xf32>
    %492 = arith.mulf %483, %430 : vector<8x64xf32>
    %493 = arith.mulf %477, %485 : vector<8x64xf32>
    %494 = arith.addf %492, %493 : vector<8x64xf32>
    %495 = math.tanh %494 : vector<8x64xf32>
    %496 = arith.mulf %491, %495 : vector<8x64xf32>
    %497 = arith.truncf %496 : vector<8x64xf32> to vector<8x64xbf16>
    %cst_96 = arith.constant dense<0.000000e+00> : vector<8x256xf32>
    %498 = tpu.matmul %497, %16, %cst_96 {dimension_numbers = #tpu.dot_dimension_numbers<[1], [0], [0], [1], [0, 0, 1, 1], [], []>} : vector<8x64xbf16>, vector<64x256xbf16>, vector<8x256xf32> -> vector<8x256xf32>
    %499 = arith.truncf %464 : vector<8x64xf32> to vector<8x64xbf16>
    %cst_97 = arith.constant dense<0.000000e+00> : vector<8x256xf32>
    %500 = tpu.matmul %499, %17, %cst_97 {dimension_numbers = #tpu.dot_dimension_numbers<[1], [0], [0], [1], [0, 0, 1, 1], [], []>} : vector<8x64xbf16>, vector<64x256xbf16>, vector<8x256xf32> -> vector<8x256xf32>
    %501 = arith.addf %498, %500 : vector<8x256xf32>
    %502 = vector.broadcast %18 : vector<1x256xf32> to vector<8x256xf32>
    %503 = arith.addf %501, %502 : vector<8x256xf32>
    %504 = vector.extract_strided_slice %503 {offsets = [0, 0], sizes = [8, 64], strides = [1, 1]} : vector<8x256xf32> to vector<8x64xf32>
    %505 = arith.negf %504 : vector<8x64xf32>
    %506 = math.exp %505 : vector<8x64xf32>
    %cst_98 = arith.constant 1.000000e+00 : f32
    %507 = vector.broadcast %cst_98 : f32 to vector<8x64xf32>
    %508 = arith.addf %507, %506 : vector<8x64xf32>
    %509 = arith.divf %507, %508 : vector<8x64xf32>
    %510 = vector.extract_strided_slice %503 {offsets = [0, 64], sizes = [8, 64], strides = [1, 1]} : vector<8x256xf32> to vector<8x64xf32>
    %511 = arith.negf %510 : vector<8x64xf32>
    %512 = math.exp %511 : vector<8x64xf32>
    %cst_99 = arith.constant 1.000000e+00 : f32
    %513 = vector.broadcast %cst_99 : f32 to vector<8x64xf32>
    %514 = arith.addf %513, %512 : vector<8x64xf32>
    %515 = arith.divf %513, %514 : vector<8x64xf32>
    %516 = vector.extract_strided_slice %503 {offsets = [0, 128], sizes = [8, 64], strides = [1, 1]} : vector<8x256xf32> to vector<8x64xf32>
    %517 = math.tanh %516 : vector<8x64xf32>
    %518 = vector.extract_strided_slice %503 {offsets = [0, 192], sizes = [8, 64], strides = [1, 1]} : vector<8x256xf32> to vector<8x64xf32>
    %519 = arith.negf %518 : vector<8x64xf32>
    %520 = math.exp %519 : vector<8x64xf32>
    %cst_100 = arith.constant 1.000000e+00 : f32
    %521 = vector.broadcast %cst_100 : f32 to vector<8x64xf32>
    %522 = arith.addf %521, %520 : vector<8x64xf32>
    %523 = arith.divf %521, %522 : vector<8x64xf32>
    %524 = arith.mulf %515, %462 : vector<8x64xf32>
    %525 = arith.mulf %509, %517 : vector<8x64xf32>
    %526 = arith.addf %524, %525 : vector<8x64xf32>
    %527 = math.tanh %526 : vector<8x64xf32>
    %528 = arith.mulf %523, %527 : vector<8x64xf32>
    %529 = vector.broadcast %19 : vector<1x64xf32> to vector<8x64xf32>
    %530 = arith.mulf %528, %529 : vector<8x64xf32>
    %cst_101 = arith.constant dense<0.000000e+00> : vector<8xf32>
    %531 = vector.multi_reduction <add>, %530, %cst_101 [1] : vector<8x64xf32> to vector<8xf32>
    %532 = vector.shape_cast %531 : vector<8xf32> to vector<8x1xf32>
    %533 = tpu.concatenate %84, %148, %212, %276, %340, %404, %468, %532 in 1 : vector<8x1xf32>, vector<8x1xf32>, vector<8x1xf32>, vector<8x1xf32>, vector<8x1xf32>, vector<8x1xf32>, vector<8x1xf32>, vector<8x1xf32> -> vector<8x8xf32>
    %c0_102 = arith.constant 0 : index
    %c0_103 = arith.constant 0 : index
    %534 = vector.load %arg10[%c0_102, %c0_103] : memref<1x1xf32, #tpu.memory_space<vmem>>, vector<1x1xf32>
    %535 = vector.broadcast %534 : vector<1x1xf32> to vector<8x8xf32>
    %536 = arith.addf %533, %535 : vector<8x8xf32>
    %cst_104 = arith.constant 9.900000e-01 : f32
    %537 = vector.broadcast %cst_104 : f32 to vector<8x8xf32>
    %538 = arith.cmpf ogt, %536, %537 : vector<8x8xf32>
    %cst_105 = arith.constant 1.000000e+00 : f32
    %539 = vector.broadcast %cst_105 : f32 to vector<8x8xf32>
    %540 = arith.select %538, %539, %536 : vector<8x8xi1>, vector<8x8xf32>
    %c0_106 = arith.constant 0 : index
    %c0_107 = arith.constant 0 : index
    %541 = vector.load %arg11[%c0_106, %c0_107] : memref<8x8xf32, #tpu.memory_space<vmem>>, vector<8x8xf32>
    tpu.vector_store %arg11[%c0_106, %c0_107], %540 {strides = array<i32>} : memref<8x8xf32, #tpu.memory_space<vmem>>, vector<8x8xf32>,
    return
  }
}

</mosaic_0001>

<llo_original>
// kernel: tpu_custom_call.1
$region0: #{tpu_custom_call.1}
  #allocation0 [shape = 'u32[]', space=smem, size = 0x4, offset = 0x4, fixed_abs, tag = 'smem constant byte address 0x4 - core index']
  #allocation1 [shape = 'u32[144,128]{1,0:T(1,128)}', space=vmem, size = 0x12000, scoped, tag = 'internal scratch']
  #allocation2 [shape = 'f32[1,1]{1,0:T(1,128)S(1)}', space=vmem, size = 0x200, scoped, tag = 'scoped memory for tpu_custom_call.1']
  %s0 = inlined_call_operand.hbm [shape: f32[8,16], index: 0, kind: input, shape index: {}]
  %s1 = inlined_call_operand.hbm [shape: bf16[16,32], index: 1, kind: input, shape index: {}]
  %s2 = inlined_call_operand.vmem [shape: f32[1,32], index: 2, kind: input, shape index: {}]
  %s3 = inlined_call_operand.hbm [shape: bf16[32,256], index: 3, kind: input, shape index: {}]
  %s4 = inlined_call_operand.hbm [shape: bf16[64,256], index: 4, kind: input, shape index: {}]
  %s5 = inlined_call_operand.vmem [shape: f32[1,256], index: 5, kind: input, shape index: {}]
  %s6 = inlined_call_operand.hbm [shape: bf16[64,256], index: 6, kind: input, shape index: {}]
  %s7 = inlined_call_operand.hbm [shape: bf16[64,256], index: 7, kind: input, shape index: {}]
  %s8 = inlined_call_operand.vmem [shape: f32[1,256], index: 8, kind: input, shape index: {}]
  %s9 = inlined_call_operand.vmem [shape: f32[1,64], index: 9, kind: input, shape index: {}]
  %s10 = inlined_call_operand.<no memory space> [shape: f32[1,1], index: 10, kind: input, shape index: {}]
  %s11 = inlined_call_operand.hbm [shape: f32[8,8], index: 11, kind: output, shape index: {}]
  %s12 = sld [smem:[#allocation0]]
  $region78: #{tpu_custom_call.1} parent=0
    _
  %s14 = ssub.s32 1, %s12
  %s15 = scalar_select 0, %s14, %s12
  %v16 = vstv %s10
  %17 = vst [vmem:[#allocation2] sm:$0x1] %v16
  $region1: #{tpu_custom_call.1} parent=0
    #allocation3 [shape = 'u8[4096]{0}', space=vmem, size = 0x1000, scoped, tag = 'input window, operand 0, single buffered']
    #allocation4 [shape = 's32[1]{0}', space=sflag, size = 0x4, scoped, tag = 'scoped memory for tpu_custom_call.1']
    #allocation5 [shape = 's32[1]{0}', space=sflag, size = 0x4, scoped, tag = 'scoped memory for tpu_custom_call.1']
    #allocation6 [shape = 'u8[4096]{0}', space=vmem, size = 0x1000, scoped, tag = 'input window, operand 1, single buffered']
    #allocation7 [shape = 's32[1]{0}', space=sflag, size = 0x4, scoped, tag = 'scoped memory for tpu_custom_call.1']
    #allocation8 [shape = 'u8[16384]{0}', space=vmem, size = 0x4000, scoped, tag = 'input window, operand 3, single buffered']
    #allocation9 [shape = 'u8[32768]{0}', space=vmem, size = 0x8000, scoped, tag = 'input window, operand 4, single buffered']
    #allocation10 [shape = 's32[1]{0}', space=sflag, size = 0x4, scoped, tag = 'scoped memory for tpu_custom_call.1']
    #allocation11 [shape = 'u8[32768]{0}', space=vmem, size = 0x8000, scoped, tag = 'input window, operand 6, single buffered']
    #allocation12 [shape = 'u8[32768]{0}', space=vmem, size = 0x8000, scoped, tag = 'input window, operand 7, single buffered']
    #allocation13 [shape = 's32[1]{0}', space=sflag, size = 0x4, scoped, tag = 'scoped memory for tpu_custom_call.1']
    #allocation14 [shape = 'u8[4096]{0}', space=vmem, size = 0x1000, scoped, tag = 'output window, operand 0, single buffered']
    %18 = vsyncpa [#allocation4], 0
    %19 = vsyncpa [#allocation7], 0
    %20 = vsyncpa [#allocation10], 0
    %21 = vsyncpa [#allocation13], 0
    %22 = vsyncpa [#allocation5], 0
    // Predicated region
    $region2: #{tpu_custom_call.1} parent=1 // pred_check
      _
    $region3: #{tpu_custom_call.1} parent=1 // pred_check_branch
      %24 = sbr.rel (0) target = $region5
    $region4: #{tpu_custom_call.1} parent=1 // pred_region
      %s26 = ssub.s32 128, 128
      %27 = vsyncadd [#allocation4], %s26
      %s29 = sshll.u32 [#allocation3], 4
      %s30 = int_to_ptr.vmem [resolvable:$true] %s29
      %32 = dma.hbm_to_vmem [thread:$0]  %s0, 128, %s30, [#allocation4]
    $region5: #{tpu_custom_call.1} parent=1 // pred_fallthru
      _
    // Predicated region
    $region6: #{tpu_custom_call.1} parent=1 // pred_check
      _
    $region7: #{tpu_custom_call.1} parent=1 // pred_check_branch
      %34 = sbr.rel (0) target = $region9
    $region8: #{tpu_custom_call.1} parent=1 // pred_region
      %s36 = ssub.s32 128, 128
      %37 = vsyncadd [#allocation7], %s36
      %s38 = sshll.u32 [#allocation6], 4
      %s39 = int_to_ptr.vmem [resolvable:$true] %s38
      %44 = dma.hbm_to_vmem [thread:$0]  %s1, 128, %s39, [#allocation7], 64, 64, 4
    $region9: #{tpu_custom_call.1} parent=1 // pred_fallthru
      _
    // Predicated region
    $region10: #{tpu_custom_call.1} parent=1 // pred_check
      _
    $region11: #{tpu_custom_call.1} parent=1 // pred_check_branch
      %46 = sbr.rel (0) target = $region13
    $region12: #{tpu_custom_call.1} parent=1 // pred_region
      _
    $region13: #{tpu_custom_call.1} parent=1 // pred_fallthru
      _
    // Predicated region
    $region14: #{tpu_custom_call.1} parent=1 // pred_check
      _
    $region15: #{tpu_custom_call.1} parent=1 // pred_check_branch
      %48 = sbr.rel (0) target = $region17
    $region16: #{tpu_custom_call.1} parent=1 // pred_region
      %s50 = ssub.s32 512, 512
      %51 = vsyncadd [#allocation7], %s50
      %s52 = sshll.u32 [#allocation8], 4
      %s53 = int_to_ptr.vmem [resolvable:$true] %s52
      %58 = dma.hbm_to_vmem [thread:$0]  %s3, 512, %s53, [#allocation7], 128, 128, 8
    $region17: #{tpu_custom_call.1} parent=1 // pred_fallthru
      _
    // Predicated region
    $region18: #{tpu_custom_call.1} parent=1 // pred_check
      _
    $region19: #{tpu_custom_call.1} parent=1 // pred_check_branch
      %60 = sbr.rel (0) target = $region21
    $region20: #{tpu_custom_call.1} parent=1 // pred_region
      %s62 = ssub.s32 1024, 1024
      %63 = vsyncadd [#allocation10], %s62
      %s64 = sshll.u32 [#allocation9], 4
      %s65 = int_to_ptr.vmem [resolvable:$true] %s64
      %70 = dma.hbm_to_vmem [thread:$0]  %s4, 1024, %s65, [#allocation10], 128, 128, 8
    $region21: #{tpu_custom_call.1} parent=1 // pred_fallthru
      _
    // Predicated region
    $region22: #{tpu_custom_call.1} parent=1 // pred_check
      _
    $region23: #{tpu_custom_call.1} parent=1 // pred_check_branch
      %72 = sbr.rel (0) target = $region25
    $region24: #{tpu_custom_call.1} parent=1 // pred_region
      _
    $region25: #{tpu_custom_call.1} parent=1 // pred_fallthru
      _
    // Predicated region
    $region26: #{tpu_custom_call.1} parent=1 // pred_check
      _
    $region27: #{tpu_custom_call.1} parent=1 // pred_check_branch
      %74 = sbr.rel (0) target = $region29
    $region28: #{tpu_custom_call.1} parent=1 // pred_region
      %s76 = ssub.s32 1024, 1024
      %77 = vsyncadd [#allocation10], %s76
      %s78 = sshll.u32 [#allocation11], 4
      %s79 = int_to_ptr.vmem [resolvable:$true] %s78
      %84 = dma.hbm_to_vmem [thread:$0]  %s6, 1024, %s79, [#allocation10], 128, 128, 8
    $region29: #{tpu_custom_call.1} parent=1 // pred_fallthru
      _
    // Predicated region
    $region30: #{tpu_custom_call.1} parent=1 // pred_check
      _
    $region31: #{tpu_custom_call.1} parent=1 // pred_check_branch
      %86 = sbr.rel (0) target = $region33
    $region32: #{tpu_custom_call.1} parent=1 // pred_region
      %s88 = ssub.s32 1024, 1024
      %89 = vsyncadd [#allocation13], %s88
      %s90 = sshll.u32 [#allocation12], 4
      %s91 = int_to_ptr.vmem [resolvable:$true] %s90
      %96 = dma.hbm_to_vmem [thread:$0]  %s7, 1024, %s91, [#allocation13], 128, 128, 8
    $region33: #{tpu_custom_call.1} parent=1 // pred_fallthru
      _
    // Predicated region
    $region34: #{tpu_custom_call.1} parent=1 // pred_check
      _
    $region35: #{tpu_custom_call.1} parent=1 // pred_check_branch
      %98 = sbr.rel (0) target = $region37
    $region36: #{tpu_custom_call.1} parent=1 // pred_region
      _
    $region37: #{tpu_custom_call.1} parent=1 // pred_fallthru
      _
    // Predicated region
    $region38: #{tpu_custom_call.1} parent=1 // pred_check
      _
    $region39: #{tpu_custom_call.1} parent=1 // pred_check_branch
      %100 = sbr.rel (0) target = $region41
    $region40: #{tpu_custom_call.1} parent=1 // pred_region
      _
    $region41: #{tpu_custom_call.1} parent=1 // pred_fallthru
      _
    // Predicated region
    $region42: #{tpu_custom_call.1} parent=1 // pred_check
      _
    $region43: #{tpu_custom_call.1} parent=1 // pred_check_branch
      %102 = sbr.rel (0) target = $region45
    $region44: #{tpu_custom_call.1} parent=1 // pred_region
      _
    $region45: #{tpu_custom_call.1} parent=1 // pred_fallthru
      _
    // Predicated region
    $region46: #{tpu_custom_call.1} parent=1 // pred_check
      _
    $region47: #{tpu_custom_call.1} parent=1 // pred_check_branch
      %104 = sbr.rel (0) target = $region49
    $region48: #{tpu_custom_call.1} parent=1 // pred_region
      %105 = dma.done [#allocation4], 128
    $region49: #{tpu_custom_call.1} parent=1 // pred_fallthru
      _
    // Predicated region
    $region50: #{tpu_custom_call.1} parent=1 // pred_check
      _
    $region51: #{tpu_custom_call.1} parent=1 // pred_check_branch
      %107 = sbr.rel (0) target = $region53
    $region52: #{tpu_custom_call.1} parent=1 // pred_region
      %108 = dma.done [#allocation7], 128
    $region53: #{tpu_custom_call.1} parent=1 // pred_fallthru
      _
    // Predicated region
    $region54: #{tpu_custom_call.1} parent=1 // pred_check
      _
    $region55: #{tpu_custom_call.1} parent=1 // pred_check_branch
      %110 = sbr.rel (0) target = $region57
    $region56: #{tpu_custom_call.1} parent=1 // pred_region
      %111 = dma.done [#allocation7], 512
    $region57: #{tpu_custom_call.1} parent=1 // pred_fallthru
      _
    // Predicated region
    $region58: #{tpu_custom_call.1} parent=1 // pred_check
      _
    $region59: #{tpu_custom_call.1} parent=1 // pred_check_branch
      %113 = sbr.rel (0) target = $region61
    $region60: #{tpu_custom_call.1} parent=1 // pred_region
      %114 = dma.done [#allocation10], 1024
    $region61: #{tpu_custom_call.1} parent=1 // pred_fallthru
      _
    // Predicated region
    $region62: #{tpu_custom_call.1} parent=1 // pred_check
      _
    $region63: #{tpu_custom_call.1} parent=1 // pred_check_branch
      %116 = sbr.rel (0) target = $region65
    $region64: #{tpu_custom_call.1} parent=1 // pred_region
      %117 = dma.done [#allocation10], 1024
    $region65: #{tpu_custom_call.1} parent=1 // pred_fallthru
      _
    // Predicated region
    $region66: #{tpu_custom_call.1} parent=1 // pred_check
      _
    $region67: #{tpu_custom_call.1} parent=1 // pred_check_branch
      %119 = sbr.rel (0) target = $region69
    $region68: #{tpu_custom_call.1} parent=1 // pred_region
      %120 = dma.done [#allocation13], 1024
    $region69: #{tpu_custom_call.1} parent=1 // pred_fallthru
      _
    %v122 = vld [vmem:[#allocation3] sm:$0xff]
    %v123 = vpack.c.bf16 %v122, %v122
    %v124 = vld [vmem:[#allocation6] sm:$0xf]
    %v125 = vld [vmem:[#allocation6 + $0x4] sm:$0xf]
    %v126 = vld [vmem:[%s2] sm:$0x1]
    %v128 = vlaneseq
    %v129 = vshrl.u32 %v128, 7
    %v130 = vsub.s32 0, %v129
    %v131 = vrot.slane %v126, %v130
    %v135 = vunpack.c.l.b16 %v124
    %v136 = vunpack.c.l.b16 %v125
    %v137 = vpack.c.b16 %v136, %v135
    %vm139 = vcmask 130048
    %v141 = vsel %vm139, %v123, 0
    %143 = vmatprep.subr.bf16.mxu0 0
    %144 = vmatpush1.bf16.msra.mxu0 %v137
    %145 = vmatprep.subr.bf16.mxu0 0
    %146 = vmatpush1.bf16.msra.mxu0 0
    %147 = vmatprep.subr.bf16.mxu0 0
    %148 = vmatpush1.bf16.msra.mxu0 0
    %149 = vmatprep.subr.bf16.mxu0 0
    %150 = vmatpush1.bf16.msra.mxu0 0
    %151 = vmatprep.subr.bf16.mxu0 0
    %152 = vmatpush1.bf16.msra.mxu0 0
    %153 = vmatprep.subr.bf16.mxu0 0
    %154 = vmatpush1.bf16.msra.mxu0 0
    %155 = vmatprep.subr.bf16.mxu0 0
    %156 = vmatpush1.bf16.msra.mxu0 0
    %157 = vmatprep.subr.bf16.mxu0 0
    %158 = vmatpush1.bf16.msra.mxu0 0
    %159 = vmatprep.subr.bf16.mxu0 0
    %160 = vmatpush1.bf16.msra.mxu0 0
    %161 = vmatprep.subr.bf16.mxu0 0
    %162 = vmatpush1.bf16.msra.mxu0 0
    %163 = vmatprep.subr.bf16.mxu0 0
    %164 = vmatpush1.bf16.msra.mxu0 0
    %165 = vmatprep.subr.bf16.mxu0 0
    %166 = vmatpush1.bf16.msra.mxu0 0
    %167 = vmatprep.subr.bf16.mxu0 0
    %168 = vmatpush1.bf16.msra.mxu0 0
    %169 = vmatprep.subr.bf16.mxu0 0
    %170 = vmatpush1.bf16.msra.mxu0 0
    %171 = vmatprep.subr.bf16.mxu0 0
    %172 = vmatpush1.bf16.msra.mxu0 0
    %173 = vmatprep.subr.bf16.mxu0 0
    %174 = vmatpush1.bf16.msra.mxu0 0
    %175 = vmatprep.mubr.bf16.mxu0 0
    %176 = vmatmul.mubr.bf16.gmra.mrb[0].mxu0 %v141
    %v177 = vpop.f32.mrb[0].mxu0
    %v178 = vadd.f32 %v131, %v177
    %v179 = vpop.f32.mrb[0].mxu0
    %v180 = vpop.f32.mrb[0].mxu0
    %v181 = vpop.f32.mrb[0].mxu0
    %182 = vdwg.mxu0
    %v183 = vmax.f32 %v178, 0.0
    %v184 = vpack.c.bf16 %v183, %v183
    %v185 = vld [vmem:[#allocation8] sm:$0xff]
    %v186 = vld [vmem:[#allocation8 + $0x8] sm:$0xff]
    %v187 = vld [vmem:[#allocation8 + $0x10] sm:$0xff]
    %v188 = vld [vmem:[#allocation8 + $0x18] sm:$0xff]
    %v189 = vld [vmem:[%s5] sm:$0x3]
    %v191 = vlaneseq
    %v192 = vshrl.u32 %v191, 7
    %v193 = vsub.s32 0, %v192
    %v194 = vrot.slane %v189, %v193
    %v195 = vlaneseq
    %v196 = vshrl.u32 %v195, 7
    %v197 = vsub.s32 1, %v196
    %v198 = vrot.slane %v189, %v197
    %v205 = vunpack.c.l.b16 %v185
    %v206 = vunpack.c.h.b16 %v185
    %v207 = vunpack.c.l.b16 %v186
    %v208 = vunpack.c.h.b16 %v186
    %v209 = vunpack.c.l.b16 %v187
    %v210 = vunpack.c.h.b16 %v187
    %v211 = vunpack.c.l.b16 %v188
    %v212 = vunpack.c.h.b16 %v188
    %v213 = vpack.c.b16 %v207, %v205
    %v214 = vpack.c.b16 %v208, %v206
    %v215 = vpack.c.b16 %v211, %v209
    %v216 = vpack.c.b16 %v212, %v210
    %vm221 = vcmask 261120
    %v223 = vsel %vm221, %v184, 0
    %225 = vmatprep.subr.bf16.mxu0 %v214
    %226 = vmatpush1.bf16.msra.mxu0 %v213
    %227 = vmatprep.subr.bf16.mxu0 %v216
    %228 = vmatpush1.bf16.msra.mxu0 %v215
    %229 = vmatprep.subr.bf16.mxu0 0
    %230 = vmatpush1.bf16.msra.mxu0 0
    %231 = vmatprep.subr.bf16.mxu0 0
    %232 = vmatpush1.bf16.msra.mxu0 0
    %233 = vmatprep.subr.bf16.mxu0 0
    %234 = vmatpush1.bf16.msra.mxu0 0
    %235 = vmatprep.subr.bf16.mxu0 0
    %236 = vmatpush1.bf16.msra.mxu0 0
    %237 = vmatprep.subr.bf16.mxu0 0
    %238 = vmatpush1.bf16.msra.mxu0 0
    %239 = vmatprep.subr.bf16.mxu0 0
    %240 = vmatpush1.bf16.msra.mxu0 0
    %241 = vmatprep.subr.bf16.mxu0 0
    %242 = vmatpush1.bf16.msra.mxu0 0
    %243 = vmatprep.subr.bf16.mxu0 0
    %244 = vmatpush1.bf16.msra.mxu0 0
    %245 = vmatprep.subr.bf16.mxu0 0
    %246 = vmatpush1.bf16.msra.mxu0 0
    %247 = vmatprep.subr.bf16.mxu0 0
    %248 = vmatpush1.bf16.msra.mxu0 0
    %249 = vmatprep.subr.bf16.mxu0 0
    %250 = vmatpush1.bf16.msra.mxu0 0
    %251 = vmatprep.subr.bf16.mxu0 0
    %252 = vmatpush1.bf16.msra.mxu0 0
    %253 = vmatprep.subr.bf16.mxu0 0
    %254 = vmatpush1.bf16.msra.mxu0 0
    %255 = vmatprep.subr.bf16.mxu0 0
    %256 = vmatpush1.bf16.msra.mxu0 0
    %257 = vmatprep.mubr.bf16.mxu0 0
    %258 = vmatmul.mubr.bf16.gmra.mrb[0].mxu0 %v223
    %v259 = vpop.f32.mrb[0].mxu0
    %v260 = vadd.f32 %v194, %v259
    %v261 = vpop.f32.mrb[0].mxu0
    %v262 = vadd.f32 %v198, %v261
    %v263 = vpop.f32.mrb[0].mxu0
    %v264 = vpop.f32.mrb[0].mxu0
    %265 = vdwg.mxu0
    %v266 = vld [vmem:[#allocation9] sm:$0xff]
    %v267 = vld [vmem:[#allocation9 + $0x8] sm:$0xff]
    %v268 = vld [vmem:[#allocation9 + $0x10] sm:$0xff]
    %v269 = vld [vmem:[#allocation9 + $0x18] sm:$0xff]
    %v270 = vld [vmem:[#allocation9 + $0x20] sm:$0xff]
    %v271 = vld [vmem:[#allocation9 + $0x28] sm:$0xff]
    %v272 = vld [vmem:[#allocation9 + $0x30] sm:$0xff]
    %v273 = vld [vmem:[#allocation9 + $0x38] sm:$0xff]
    %v274 = vld [vmem:[#allocation11] sm:$0xff]
    %v275 = vld [vmem:[#allocation11 + $0x8] sm:$0xff]
    %v276 = vld [vmem:[#allocation11 + $0x10] sm:$0xff]
    %v277 = vld [vmem:[#allocation11 + $0x18] sm:$0xff]
    %v278 = vld [vmem:[#allocation11 + $0x20] sm:$0xff]
    %v279 = vld [vmem:[#allocation11 + $0x28] sm:$0xff]
    %v280 = vld [vmem:[#allocation11 + $0x30] sm:$0xff]
    %v281 = vld [vmem:[#allocation11 + $0x38] sm:$0xff]
    %v282 = vld [vmem:[#allocation12] sm:$0xff]
    %v283 = vld [vmem:[#allocation12 + $0x8] sm:$0xff]
    %v284 = vld [vmem:[#allocation12 + $0x10] sm:$0xff]
    %v285 = vld [vmem:[#allocation12 + $0x18] sm:$0xff]
    %v286 = vld [vmem:[#allocation12 + $0x20] sm:$0xff]
    %v287 = vld [vmem:[#allocation12 + $0x28] sm:$0xff]
    %v288 = vld [vmem:[#allocation12 + $0x30] sm:$0xff]
    %v289 = vld [vmem:[#allocation12 + $0x38] sm:$0xff]
    %v290 = vld [vmem:[%s8] sm:$0x3]
    %v291 = vld [vmem:[%s9] sm:$0x1]
    %v300 = vunpack.c.l.b16 %v266
    %v301 = vunpack.c.h.b16 %v266
    %v302 = vunpack.c.l.b16 %v267
    %v303 = vunpack.c.h.b16 %v267
    %v304 = vunpack.c.l.b16 %v268
    %v305 = vunpack.c.h.b16 %v268
    %v306 = vunpack.c.l.b16 %v269
    %v307 = vunpack.c.h.b16 %v269
    %v308 = vunpack.c.l.b16 %v270
    %v309 = vunpack.c.h.b16 %v270
    %v310 = vunpack.c.l.b16 %v271
    %v311 = vunpack.c.h.b16 %v271
    %v312 = vunpack.c.l.b16 %v272
    %v313 = vunpack.c.h.b16 %v272
    %v314 = vunpack.c.l.b16 %v273
    %v315 = vunpack.c.h.b16 %v273
    %v316 = vpack.c.b16 %v302, %v300
    %v317 = vpack.c.b16 %v303, %v301
    %v318 = vpack.c.b16 %v306, %v304
    %v319 = vpack.c.b16 %v307, %v305
    %v320 = vpack.c.b16 %v310, %v308
    %v321 = vpack.c.b16 %v311, %v309
    %v322 = vpack.c.b16 %v314, %v312
    %v323 = vpack.c.b16 %v315, %v313
    %vm332 = vcmask 523264
    %v334 = vsel %vm332, 0, 0
    %336 = vmatprep.subr.bf16.mxu0 %v317
    %337 = vmatpush1.bf16.msra.mxu0 %v316
    %338 = vmatprep.subr.bf16.mxu0 %v319
    %339 = vmatpush1.bf16.msra.mxu0 %v318
    %340 = vmatprep.subr.bf16.mxu0 %v321
    %341 = vmatpush1.bf16.msra.mxu0 %v320
    %342 = vmatprep.subr.bf16.mxu0 %v323
    %343 = vmatpush1.bf16.msra.mxu0 %v322
    %344 = vmatprep.subr.bf16.mxu0 0
    %345 = vmatpush1.bf16.msra.mxu0 0
    %346 = vmatprep.subr.bf16.mxu0 0
    %347 = vmatpush1.bf16.msra.mxu0 0
    %348 = vmatprep.subr.bf16.mxu0 0
    %349 = vmatpush1.bf16.msra.mxu0 0
    %350 = vmatprep.subr.bf16.mxu0 0
    %351 = vmatpush1.bf16.msra.mxu0 0
    %352 = vmatprep.subr.bf16.mxu0 0
    %353 = vmatpush1.bf16.msra.mxu0 0
    %354 = vmatprep.subr.bf16.mxu0 0
    %355 = vmatpush1.bf16.msra.mxu0 0
    %356 = vmatprep.subr.bf16.mxu0 0
    %357 = vmatpush1.bf16.msra.mxu0 0
    %358 = vmatprep.subr.bf16.mxu0 0
    %359 = vmatpush1.bf16.msra.mxu0 0
    %360 = vmatprep.subr.bf16.mxu0 0
    %361 = vmatpush1.bf16.msra.mxu0 0
    %362 = vmatprep.subr.bf16.mxu0 0
    %363 = vmatpush1.bf16.msra.mxu0 0
    %364 = vmatprep.subr.bf16.mxu0 0
    %365 = vmatpush1.bf16.msra.mxu0 0
    %366 = vmatprep.subr.bf16.mxu0 0
    %367 = vmatpush1.bf16.msra.mxu0 0
    %368 = vmatprep.mubr.bf16.mxu0 0
    %369 = vmatmul.mubr.bf16.gmra.mrb[0].mxu0 %v334
    %v370 = vpop.f32.mrb[0].mxu0
    %v371 = vadd.f32 0.0, %v370
    %v372 = vpop.f32.mrb[0].mxu0
    %v373 = vadd.f32 0.0, %v372
    %v374 = vpop.f32.mrb[0].mxu0
    %v375 = vpop.f32.mrb[0].mxu0
    %376 = vdwg.mxu0
    %v377 = vadd.f32 %v260, %v371
    %v378 = vadd.f32 %v262, %v373
    %v379 = vxor.u32 %v377, 2147483648
    %v380 = vmul.f32 %v379, 1.442695
    %v381 = vpow.pop %v380
    %v382 = vadd.f32 %v381, 1.0
    %v383 = vrcp.pop %v382
    %v384 = vmul.f32 1.0, %v383
    %v385 = vtanh.pop %v378
    %v386 = vxor.u32 %v378, 2147483648
    %v387 = vmul.f32 %v386, 1.442695
    %v388 = vpow.pop %v387
    %v389 = vadd.f32 %v388, 1.0
    %v390 = vrcp.pop %v389
    %v391 = vmul.f32 1.0, %v390
    %v392 = vmul.f32 %v384, 0.0
    %v393 = vmul.f32 %v384, %v385
    %395 = vrot.lane.b32.xlu0 %v393, 64
    %v396 = vpop.permute.xlu0 %395
    %v398 = vadd.f32 %v392, %v396
    %v399 = vtanh.pop %v398
    %v400 = vmul.f32 %v391, %v399
    %v401 = vpack.c.bf16 %v400, %v400
    %v410 = vunpack.c.l.b16 %v282
    %v411 = vunpack.c.h.b16 %v282
    %v412 = vunpack.c.l.b16 %v283
    %v413 = vunpack.c.h.b16 %v283
    %v414 = vunpack.c.l.b16 %v284
    %v415 = vunpack.c.h.b16 %v284
    %v416 = vunpack.c.l.b16 %v285
    %v417 = vunpack.c.h.b16 %v285
    %v418 = vunpack.c.l.b16 %v286
    %v419 = vunpack.c.h.b16 %v286
    %v420 = vunpack.c.l.b16 %v287
    %v421 = vunpack.c.h.b16 %v287
    %v422 = vunpack.c.l.b16 %v288
    %v423 = vunpack.c.h.b16 %v288
    %v424 = vunpack.c.l.b16 %v289
    %v425 = vunpack.c.h.b16 %v289
    %v426 = vpack.c.b16 %v412, %v410
    %v427 = vpack.c.b16 %v413, %v411
    %v428 = vpack.c.b16 %v416, %v414
    %v429 = vpack.c.b16 %v417, %v415
    %v430 = vpack.c.b16 %v420, %v418
    %v431 = vpack.c.b16 %v421, %v419
    %v432 = vpack.c.b16 %v424, %v422
    %v433 = vpack.c.b16 %v425, %v423
    %442 = vmatprep.subr.bf16.mxu0 %v427
    %443 = vmatpush1.bf16.msra.mxu0 %v426
    %444 = vmatprep.subr.bf16.mxu0 %v429
    %445 = vmatpush1.bf16.msra.mxu0 %v428
    %446 = vmatprep.subr.bf16.mxu0 %v431
    %447 = vmatpush1.bf16.msra.mxu0 %v430
    %448 = vmatprep.subr.bf16.mxu0 %v433
    %449 = vmatpush1.bf16.msra.mxu0 %v432
    %450 = vmatprep.subr.bf16.mxu0 0
    %451 = vmatpush1.bf16.msra.mxu0 0
    %452 = vmatprep.subr.bf16.mxu0 0
    %453 = vmatpush1.bf16.msra.mxu0 0
    %454 = vmatprep.subr.bf16.mxu0 0
    %455 = vmatpush1.bf16.msra.mxu0 0
    %456 = vmatprep.subr.bf16.mxu0 0
    %457 = vmatpush1.bf16.msra.mxu0 0
    %458 = vmatprep.subr.bf16.mxu0 0
    %459 = vmatpush1.bf16.msra.mxu0 0
    %460 = vmatprep.subr.bf16.mxu0 0
    %461 = vmatpush1.bf16.msra.mxu0 0
    %462 = vmatprep.subr.bf16.mxu0 0
    %463 = vmatpush1.bf16.msra.mxu0 0
    %464 = vmatprep.subr.bf16.mxu0 0
    %465 = vmatpush1.bf16.msra.mxu0 0
    %466 = vmatprep.subr.bf16.mxu0 0
    %467 = vmatpush1.bf16.msra.mxu0 0
    %468 = vmatprep.subr.bf16.mxu0 0
    %469 = vmatpush1.bf16.msra.mxu0 0
    %470 = vmatprep.subr.bf16.mxu0 0
    %471 = vmatpush1.bf16.msra.mxu0 0
    %472 = vmatprep.subr.bf16.mxu0 0
    %473 = vmatpush1.bf16.msra.mxu0 0
    %474 = vmatprep.mubr.bf16.mxu0 0
    %475 = vmatmul.mubr.bf16.gmra.mrb[0].mxu0 %v334
    %v476 = vpop.f32.mrb[0].mxu0
    %v477 = vadd.f32 0.0, %v476
    %v478 = vpop.f32.mrb[0].mxu0
    %v479 = vadd.f32 0.0, %v478
    %v480 = vpop.f32.mrb[0].mxu0
    %v481 = vpop.f32.mrb[0].mxu0
    %482 = vdwg.mxu0
    %484 = vrot.lane.b32.xlu0 %v401, 64
    %v485 = vpop.permute.xlu0 %484
    %v494 = vunpack.c.l.b16 %v274
    %v495 = vunpack.c.h.b16 %v274
    %v496 = vunpack.c.l.b16 %v275
    %v497 = vunpack.c.h.b16 %v275
    %v498 = vunpack.c.l.b16 %v276
    %v499 = vunpack.c.h.b16 %v276
    %v500 = vunpack.c.l.b16 %v277
    %v501 = vunpack.c.h.b16 %v277
    %v502 = vunpack.c.l.b16 %v278
    %v503 = vunpack.c.h.b16 %v278
    %v504 = vunpack.c.l.b16 %v279
    %v505 = vunpack.c.h.b16 %v279
    %v506 = vunpack.c.l.b16 %v280
    %v507 = vunpack.c.h.b16 %v280
    %v508 = vunpack.c.l.b16 %v281
    %v509 = vunpack.c.h.b16 %v281
    %v510 = vpack.c.b16 %v496, %v494
    %v511 = vpack.c.b16 %v497, %v495
    %v512 = vpack.c.b16 %v500, %v498
    %v513 = vpack.c.b16 %v501, %v499
    %v514 = vpack.c.b16 %v504, %v502
    %v515 = vpack.c.b16 %v505, %v503
    %v516 = vpack.c.b16 %v508, %v506
    %v517 = vpack.c.b16 %v509, %v507
    %v527 = vsel %vm332, %v485, 0
    %529 = vmatprep.subr.bf16.mxu0 %v511
    %530 = vmatpush1.bf16.msra.mxu0 %v510
    %531 = vmatprep.subr.bf16.mxu0 %v513
    %532 = vmatpush1.bf16.msra.mxu0 %v512
    %533 = vmatprep.subr.bf16.mxu0 %v515
    %534 = vmatpush1.bf16.msra.mxu0 %v514
    %535 = vmatprep.subr.bf16.mxu0 %v517
    %536 = vmatpush1.bf16.msra.mxu0 %v516
    %537 = vmatprep.subr.bf16.mxu0 0
    %538 = vmatpush1.bf16.msra.mxu0 0
    %539 = vmatprep.subr.bf16.mxu0 0
    %540 = vmatpush1.bf16.msra.mxu0 0
    %541 = vmatprep.subr.bf16.mxu0 0
    %542 = vmatpush1.bf16.msra.mxu0 0
    %543 = vmatprep.subr.bf16.mxu0 0
    %544 = vmatpush1.bf16.msra.mxu0 0
    %545 = vmatprep.subr.bf16.mxu0 0
    %546 = vmatpush1.bf16.msra.mxu0 0
    %547 = vmatprep.subr.bf16.mxu0 0
    %548 = vmatpush1.bf16.msra.mxu0 0
    %549 = vmatprep.subr.bf16.mxu0 0
    %550 = vmatpush1.bf16.msra.mxu0 0
    %551 = vmatprep.subr.bf16.mxu0 0
    %552 = vmatpush1.bf16.msra.mxu0 0
    %553 = vmatprep.subr.bf16.mxu0 0
    %554 = vmatpush1.bf16.msra.mxu0 0
    %555 = vmatprep.subr.bf16.mxu0 0
    %556 = vmatpush1.bf16.msra.mxu0 0
    %557 = vmatprep.subr.bf16.mxu0 0
    %558 = vmatpush1.bf16.msra.mxu0 0
    %559 = vmatprep.subr.bf16.mxu0 0
    %560 = vmatpush1.bf16.msra.mxu0 0
    %561 = vmatprep.mubr.bf16.mxu0 0
    %562 = vmatmul.mubr.bf16.gmra.mrb[0].mxu0 %v527
    %v563 = vpop.f32.mrb[0].mxu0
    %v564 = vadd.f32 %v477, %v563
    %v565 = vpop.f32.mrb[0].mxu0
    %v566 = vadd.f32 %v479, %v565
    %v567 = vpop.f32.mrb[0].mxu0
    %v568 = vpop.f32.mrb[0].mxu0
    %569 = vdwg.mxu0
    %v571 = vlaneseq
    %v572 = vshrl.u32 %v571, 7
    %v573 = vsub.s32 0, %v572
    %v574 = vrot.slane %v290, %v573
    %v575 = vlaneseq
    %v576 = vshrl.u32 %v575, 7
    %v577 = vsub.s32 1, %v576
    %v578 = vrot.slane %v290, %v577
    %v581 = vadd.f32 %v564, %v574
    %v582 = vadd.f32 %v566, %v578
    %v583 = vxor.u32 %v581, 2147483648
    %v584 = vmul.f32 %v583, 1.442695
    %v585 = vpow.pop %v584
    %v586 = vadd.f32 %v585, 1.0
    %v587 = vrcp.pop %v586
    %v588 = vmul.f32 1.0, %v587
    %v589 = vtanh.pop %v582
    %v590 = vxor.u32 %v582, 2147483648
    %v591 = vmul.f32 %v590, 1.442695
    %v592 = vpow.pop %v591
    %v593 = vadd.f32 %v592, 1.0
    %v594 = vrcp.pop %v593
    %v595 = vmul.f32 1.0, %v594
    %v596 = vmul.f32 %v588, 0.0
    %v597 = vmul.f32 %v588, %v589
    %599 = vrot.lane.b32.xlu0 %v597, 64
    %v600 = vpop.permute.xlu0 %599
    %v602 = vadd.f32 %v596, %v600
    %v603 = vtanh.pop %v602
    %v604 = vmul.f32 %v595, %v603
    %v606 = vlaneseq
    %v607 = vshrl.u32 %v606, 7
    %v608 = vsub.s32 0, %v607
    %v609 = vrot.slane %v291, %v608
    %610 = vrot.lane.b32.xlu0 %v609, 64
    %v611 = vpop.permute.xlu0 %610
    %v613 = vmul.f32 %v604, %v611
    %615 = vrot.lane.b32.xlu0 %v613, 64
    %v616 = vpop.permute.xlu0 %615
    %v618 = vsel %vm332, %v616, 0.0
    %619 = vadd.xlane.f32.xlu0 %v618
    %v620 = vpop.xlane.xlu0 %619
    %621 = vmatprep.subr.bf16.mxu0 %v317
    %622 = vmatpush1.bf16.msra.mxu0 %v316
    %623 = vmatprep.subr.bf16.mxu0 %v319
    %624 = vmatpush1.bf16.msra.mxu0 %v318
    %625 = vmatprep.subr.bf16.mxu0 %v321
    %626 = vmatpush1.bf16.msra.mxu0 %v320
    %627 = vmatprep.subr.bf16.mxu0 %v323
    %628 = vmatpush1.bf16.msra.mxu0 %v322
    %629 = vmatprep.subr.bf16.mxu0 0
    %630 = vmatpush1.bf16.msra.mxu0 0
    %631 = vmatprep.subr.bf16.mxu0 0
    %632 = vmatpush1.bf16.msra.mxu0 0
    %633 = vmatprep.subr.bf16.mxu0 0
    %634 = vmatpush1.bf16.msra.mxu0 0
    %635 = vmatprep.subr.bf16.mxu0 0
    %636 = vmatpush1.bf16.msra.mxu0 0
    %637 = vmatprep.subr.bf16.mxu0 0
    %638 = vmatpush1.bf16.msra.mxu0 0
    %639 = vmatprep.subr.bf16.mxu0 0
    %640 = vmatpush1.bf16.msra.mxu0 0
    %641 = vmatprep.subr.bf16.mxu0 0
    %642 = vmatpush1.bf16.msra.mxu0 0
    %643 = vmatprep.subr.bf16.mxu0 0
    %644 = vmatpush1.bf16.msra.mxu0 0
    %645 = vmatprep.subr.bf16.mxu0 0
    %646 = vmatpush1.bf16.msra.mxu0 0
    %647 = vmatprep.subr.bf16.mxu0 0
    %648 = vmatpush1.bf16.msra.mxu0 0
    %649 = vmatprep.subr.bf16.mxu0 0
    %650 = vmatpush1.bf16.msra.mxu0 0
    %651 = vmatprep.subr.bf16.mxu0 0
    %652 = vmatpush1.bf16.msra.mxu0 0
    %653 = vmatprep.mubr.bf16.mxu0 0
    %654 = vmatmul.mubr.bf16.gmra.mrb[0].mxu0 %v527
    %v655 = vpop.f32.mrb[0].mxu0
    %v656 = vadd.f32 0.0, %v655
    %v657 = vpop.f32.mrb[0].mxu0
    %v658 = vadd.f32 0.0, %v657
    %v659 = vpop.f32.mrb[0].mxu0
    %v660 = vpop.f32.mrb[0].mxu0
    %661 = vdwg.mxu0
    %v662 = vadd.f32 %v260, %v656
    %v663 = vadd.f32 %v262, %v658
    %v664 = vxor.u32 %v662, 2147483648
    %v665 = vmul.f32 %v664, 1.442695
    %v666 = vpow.pop %v665
    %v667 = vadd.f32 %v666, 1.0
    %v668 = vrcp.pop %v667
    %v669 = vmul.f32 1.0, %v668
    %v670 = vtanh.pop %v663
    %v671 = vxor.u32 %v663, 2147483648
    %v672 = vmul.f32 %v671, 1.442695
    %v673 = vpow.pop %v672
    %v674 = vadd.f32 %v673, 1.0
    %v675 = vrcp.pop %v674
    %v676 = vmul.f32 1.0, %v675
    %v677 = vmul.f32 %v669, %v398
    %v678 = vmul.f32 %v669, %v670
    %680 = vrot.lane.b32.xlu0 %v678, 64
    %v681 = vpop.permute.xlu0 %680
    %v683 = vadd.f32 %v677, %v681
    %v684 = vtanh.pop %v683
    %v685 = vmul.f32 %v676, %v684
    %v686 = vpack.c.bf16 %v685, %v685
    %v687 = vpack.c.bf16 %v604, %v604
    %689 = vrot.lane.b32.xlu0 %v687, 64
    %v690 = vpop.permute.xlu0 %689
    %v692 = vsel %vm332, %v690, 0
    %694 = vmatprep.subr.bf16.mxu0 %v427
    %695 = vmatpush1.bf16.msra.mxu0 %v426
    %696 = vmatprep.subr.bf16.mxu0 %v429
    %697 = vmatpush1.bf16.msra.mxu0 %v428
    %698 = vmatprep.subr.bf16.mxu0 %v431
    %699 = vmatpush1.bf16.msra.mxu0 %v430
    %700 = vmatprep.subr.bf16.mxu0 %v433
    %701 = vmatpush1.bf16.msra.mxu0 %v432
    %702 = vmatprep.subr.bf16.mxu0 0
    %703 = vmatpush1.bf16.msra.mxu0 0
    %704 = vmatprep.subr.bf16.mxu0 0
    %705 = vmatpush1.bf16.msra.mxu0 0
    %706 = vmatprep.subr.bf16.mxu0 0
    %707 = vmatpush1.bf16.msra.mxu0 0
    %708 = vmatprep.subr.bf16.mxu0 0
    %709 = vmatpush1.bf16.msra.mxu0 0
    %710 = vmatprep.subr.bf16.mxu0 0
    %711 = vmatpush1.bf16.msra.mxu0 0
    %712 = vmatprep.subr.bf16.mxu0 0
    %713 = vmatpush1.bf16.msra.mxu0 0
    %714 = vmatprep.subr.bf16.mxu0 0
    %715 = vmatpush1.bf16.msra.mxu0 0
    %716 = vmatprep.subr.bf16.mxu0 0
    %717 = vmatpush1.bf16.msra.mxu0 0
    %718 = vmatprep.subr.bf16.mxu0 0
    %719 = vmatpush1.bf16.msra.mxu0 0
    %720 = vmatprep.subr.bf16.mxu0 0
    %721 = vmatpush1.bf16.msra.mxu0 0
    %722 = vmatprep.subr.bf16.mxu0 0
    %723 = vmatpush1.bf16.msra.mxu0 0
    %724 = vmatprep.subr.bf16.mxu0 0
    %725 = vmatpush1.bf16.msra.mxu0 0
    %726 = vmatprep.mubr.bf16.mxu0 0
    %727 = vmatmul.mubr.bf16.gmra.mrb[0].mxu0 %v692
    %v728 = vpop.f32.mrb[0].mxu0
    %v729 = vadd.f32 0.0, %v728
    %v730 = vpop.f32.mrb[0].mxu0
    %v731 = vadd.f32 0.0, %v730
    %v732 = vpop.f32.mrb[0].mxu0
    %v733 = vpop.f32.mrb[0].mxu0
    %734 = vdwg.mxu0
    %736 = vrot.lane.b32.xlu0 %v686, 64
    %v737 = vpop.permute.xlu0 %736
    %v739 = vsel %vm332, %v737, 0
    %741 = vmatprep.subr.bf16.mxu0 %v511
    %742 = vmatpush1.bf16.msra.mxu0 %v510
    %743 = vmatprep.subr.bf16.mxu0 %v513
    %744 = vmatpush1.bf16.msra.mxu0 %v512
    %745 = vmatprep.subr.bf16.mxu0 %v515
    %746 = vmatpush1.bf16.msra.mxu0 %v514
    %747 = vmatprep.subr.bf16.mxu0 %v517
    %748 = vmatpush1.bf16.msra.mxu0 %v516
    %749 = vmatprep.subr.bf16.mxu0 0
    %750 = vmatpush1.bf16.msra.mxu0 0
    %751 = vmatprep.subr.bf16.mxu0 0
    %752 = vmatpush1.bf16.msra.mxu0 0
    %753 = vmatprep.subr.bf16.mxu0 0
    %754 = vmatpush1.bf16.msra.mxu0 0
    %755 = vmatprep.subr.bf16.mxu0 0
    %756 = vmatpush1.bf16.msra.mxu0 0
    %757 = vmatprep.subr.bf16.mxu0 0
    %758 = vmatpush1.bf16.msra.mxu0 0
    %759 = vmatprep.subr.bf16.mxu0 0
    %760 = vmatpush1.bf16.msra.mxu0 0
    %761 = vmatprep.subr.bf16.mxu0 0
    %762 = vmatpush1.bf16.msra.mxu0 0
    %763 = vmatprep.subr.bf16.mxu0 0
    %764 = vmatpush1.bf16.msra.mxu0 0
    %765 = vmatprep.subr.bf16.mxu0 0
    %766 = vmatpush1.bf16.msra.mxu0 0
    %767 = vmatprep.subr.bf16.mxu0 0
    %768 = vmatpush1.bf16.msra.mxu0 0
    %769 = vmatprep.subr.bf16.mxu0 0
    %770 = vmatpush1.bf16.msra.mxu0 0
    %771 = vmatprep.subr.bf16.mxu0 0
    %772 = vmatpush1.bf16.msra.mxu0 0
    %773 = vmatprep.mubr.bf16.mxu0 0
    %774 = vmatmul.mubr.bf16.gmra.mrb[0].mxu0 %v739
    %v775 = vpop.f32.mrb[0].mxu0
    %v776 = vadd.f32 %v729, %v775
    %v777 = vpop.f32.mrb[0].mxu0
    %v778 = vadd.f32 %v731, %v777
    %v779 = vpop.f32.mrb[0].mxu0
    %v780 = vpop.f32.mrb[0].mxu0
    %781 = vdwg.mxu0
    %v782 = vadd.f32 %v776, %v574
    %v783 = vadd.f32 %v778, %v578
    %v784 = vxor.u32 %v782, 2147483648
    %v785 = vmul.f32 %v784, 1.442695
    %v786 = vpow.pop %v785
    %v787 = vadd.f32 %v786, 1.0
    %v788 = vrcp.pop %v787
    %v789 = vmul.f32 1.0, %v788
    %v790 = vtanh.pop %v783
    %v791 = vxor.u32 %v783, 2147483648
    %v792 = vmul.f32 %v791, 1.442695
    %v793 = vpow.pop %v792
    %v794 = vadd.f32 %v793, 1.0
    %v795 = vrcp.pop %v794
    %v796 = vmul.f32 1.0, %v795
    %v797 = vmul.f32 %v789, %v602
    %v798 = vmul.f32 %v789, %v790
    %800 = vrot.lane.b32.xlu0 %v798, 64
    %v801 = vpop.permute.xlu0 %800
    %v803 = vadd.f32 %v797, %v801
    %v804 = vtanh.pop %v803
    %v805 = vmul.f32 %v796, %v804
    %v806 = vmul.f32 %v805, %v611
    %808 = vrot.lane.b32.xlu0 %v806, 64
    %v809 = vpop.permute.xlu0 %808
    %v811 = vsel %vm332, %v809, 0.0
    %812 = vadd.xlane.f32.xlu0 %v811
    %v813 = vpop.xlane.xlu0 %812
    %814 = vmatprep.subr.bf16.mxu0 %v317
    %815 = vmatpush1.bf16.msra.mxu0 %v316
    %816 = vmatprep.subr.bf16.mxu0 %v319
    %817 = vmatpush1.bf16.msra.mxu0 %v318
    %818 = vmatprep.subr.bf16.mxu0 %v321
    %819 = vmatpush1.bf16.msra.mxu0 %v320
    %820 = vmatprep.subr.bf16.mxu0 %v323
    %821 = vmatpush1.bf16.msra.mxu0 %v322
    %822 = vmatprep.subr.bf16.mxu0 0
    %823 = vmatpush1.bf16.msra.mxu0 0
    %824 = vmatprep.subr.bf16.mxu0 0
    %825 = vmatpush1.bf16.msra.mxu0 0
    %826 = vmatprep.subr.bf16.mxu0 0
    %827 = vmatpush1.bf16.msra.mxu0 0
    %828 = vmatprep.subr.bf16.mxu0 0
    %829 = vmatpush1.bf16.msra.mxu0 0
    %830 = vmatprep.subr.bf16.mxu0 0
    %831 = vmatpush1.bf16.msra.mxu0 0
    %832 = vmatprep.subr.bf16.mxu0 0
    %833 = vmatpush1.bf16.msra.mxu0 0
    %834 = vmatprep.subr.bf16.mxu0 0
    %835 = vmatpush1.bf16.msra.mxu0 0
    %836 = vmatprep.subr.bf16.mxu0 0
    %837 = vmatpush1.bf16.msra.mxu0 0
    %838 = vmatprep.subr.bf16.mxu0 0
    %839 = vmatpush1.bf16.msra.mxu0 0
    %840 = vmatprep.subr.bf16.mxu0 0
    %841 = vmatpush1.bf16.msra.mxu0 0
    %842 = vmatprep.subr.bf16.mxu0 0
    %843 = vmatpush1.bf16.msra.mxu0 0
    %844 = vmatprep.subr.bf16.mxu0 0
    %845 = vmatpush1.bf16.msra.mxu0 0
    %846 = vmatprep.mubr.bf16.mxu0 0
    %847 = vmatmul.mubr.bf16.gmra.mrb[0].mxu0 %v739
    %v848 = vpop.f32.mrb[0].mxu0
    %v849 = vadd.f32 0.0, %v848
    %v850 = vpop.f32.mrb[0].mxu0
    %v851 = vadd.f32 0.0, %v850
    %v852 = vpop.f32.mrb[0].mxu0
    %v853 = vpop.f32.mrb[0].mxu0
    %854 = vdwg.mxu0
    %v855 = vadd.f32 %v260, %v849
    %v856 = vadd.f32 %v262, %v851
    %v857 = vxor.u32 %v855, 2147483648
    %v858 = vmul.f32 %v857, 1.442695
    %v859 = vpow.pop %v858
    %v860 = vadd.f32 %v859, 1.0
    %v861 = vrcp.pop %v860
    %v862 = vmul.f32 1.0, %v861
    %v863 = vtanh.pop %v856
    %v864 = vxor.u32 %v856, 2147483648
    %v865 = vmul.f32 %v864, 1.442695
    %v866 = vpow.pop %v865
    %v867 = vadd.f32 %v866, 1.0
    %v868 = vrcp.pop %v867
    %v869 = vmul.f32 1.0, %v868
    %v870 = vmul.f32 %v862, %v683
    %v871 = vmul.f32 %v862, %v863
    %873 = vrot.lane.b32.xlu0 %v871, 64
    %v874 = vpop.permute.xlu0 %873
    %v876 = vadd.f32 %v870, %v874
    %v877 = vtanh.pop %v876
    %v878 = vmul.f32 %v869, %v877
    %v879 = vpack.c.bf16 %v878, %v878
    %v880 = vpack.c.bf16 %v805, %v805
    %882 = vrot.lane.b32.xlu0 %v880, 64
    %v883 = vpop.permute.xlu0 %882
    %v885 = vsel %vm332, %v883, 0
    %887 = vmatprep.subr.bf16.mxu0 %v427
    %888 = vmatpush1.bf16.msra.mxu0 %v426
    %889 = vmatprep.subr.bf16.mxu0 %v429
    %890 = vmatpush1.bf16.msra.mxu0 %v428
    %891 = vmatprep.subr.bf16.mxu0 %v431
    %892 = vmatpush1.bf16.msra.mxu0 %v430
    %893 = vmatprep.subr.bf16.mxu0 %v433
    %894 = vmatpush1.bf16.msra.mxu0 %v432
    %895 = vmatprep.subr.bf16.mxu0 0
    %896 = vmatpush1.bf16.msra.mxu0 0
    %897 = vmatprep.subr.bf16.mxu0 0
    %898 = vmatpush1.bf16.msra.mxu0 0
    %899 = vmatprep.subr.bf16.mxu0 0
    %900 = vmatpush1.bf16.msra.mxu0 0
    %901 = vmatprep.subr.bf16.mxu0 0
    %902 = vmatpush1.bf16.msra.mxu0 0
    %903 = vmatprep.subr.bf16.mxu0 0
    %904 = vmatpush1.bf16.msra.mxu0 0
    %905 = vmatprep.subr.bf16.mxu0 0
    %906 = vmatpush1.bf16.msra.mxu0 0
    %907 = vmatprep.subr.bf16.mxu0 0
    %908 = vmatpush1.bf16.msra.mxu0 0
    %909 = vmatprep.subr.bf16.mxu0 0
    %910 = vmatpush1.bf16.msra.mxu0 0
    %911 = vmatprep.subr.bf16.mxu0 0
    %912 = vmatpush1.bf16.msra.mxu0 0
    %913 = vmatprep.subr.bf16.mxu0 0
    %914 = vmatpush1.bf16.msra.mxu0 0
    %915 = vmatprep.subr.bf16.mxu0 0
    %916 = vmatpush1.bf16.msra.mxu0 0
    %917 = vmatprep.subr.bf16.mxu0 0
    %918 = vmatpush1.bf16.msra.mxu0 0
    %919 = vmatprep.mubr.bf16.mxu0 0
    %920 = vmatmul.mubr.bf16.gmra.mrb[0].mxu0 %v885
    %v921 = vpop.f32.mrb[0].mxu0
    %v922 = vadd.f32 0.0, %v921
    %v923 = vpop.f32.mrb[0].mxu0
    %v924 = vadd.f32 0.0, %v923
    %v925 = vpop.f32.mrb[0].mxu0
    %v926 = vpop.f32.mrb[0].mxu0
    %927 = vdwg.mxu0
    %929 = vrot.lane.b32.xlu0 %v879, 64
    %v930 = vpop.permute.xlu0 %929
    %v932 = vsel %vm332, %v930, 0
    %934 = vmatprep.subr.bf16.mxu0 %v511
    %935 = vmatpush1.bf16.msra.mxu0 %v510
    %936 = vmatprep.subr.bf16.mxu0 %v513
    %937 = vmatpush1.bf16.msra.mxu0 %v512
    %938 = vmatprep.subr.bf16.mxu0 %v515
    %939 = vmatpush1.bf16.msra.mxu0 %v514
    %940 = vmatprep.subr.bf16.mxu0 %v517
    %941 = vmatpush1.bf16.msra.mxu0 %v516
    %942 = vmatprep.subr.bf16.mxu0 0
    %943 = vmatpush1.bf16.msra.mxu0 0
    %944 = vmatprep.subr.bf16.mxu0 0
    %945 = vmatpush1.bf16.msra.mxu0 0
    %946 = vmatprep.subr.bf16.mxu0 0
    %947 = vmatpush1.bf16.msra.mxu0 0
    %948 = vmatprep.subr.bf16.mxu0 0
    %949 = vmatpush1.bf16.msra.mxu0 0
    %950 = vmatprep.subr.bf16.mxu0 0
    %951 = vmatpush1.bf16.msra.mxu0 0
    %952 = vmatprep.subr.bf16.mxu0 0
    %953 = vmatpush1.bf16.msra.mxu0 0
    %954 = vmatprep.subr.bf16.mxu0 0
    %955 = vmatpush1.bf16.msra.mxu0 0
    %956 = vmatprep.subr.bf16.mxu0 0
    %957 = vmatpush1.bf16.msra.mxu0 0
    %958 = vmatprep.subr.bf16.mxu0 0
    %959 = vmatpush1.bf16.msra.mxu0 0
    %960 = vmatprep.subr.bf16.mxu0 0
    %961 = vmatpush1.bf16.msra.mxu0 0
    %962 = vmatprep.subr.bf16.mxu0 0
    %963 = vmatpush1.bf16.msra.mxu0 0
    %964 = vmatprep.subr.bf16.mxu0 0
    %965 = vmatpush1.bf16.msra.mxu0 0
    %966 = vmatprep.mubr.bf16.mxu0 0
    %967 = vmatmul.mubr.bf16.gmra.mrb[0].mxu0 %v932
    %v968 = vpop.f32.mrb[0].mxu0
    %v969 = vadd.f32 %v922, %v968
    %v970 = vpop.f32.mrb[0].mxu0
    %v971 = vadd.f32 %v924, %v970
    %v972 = vpop.f32.mrb[0].mxu0
    %v973 = vpop.f32.mrb[0].mxu0
    %974 = vdwg.mxu0
    %v975 = vadd.f32 %v969, %v574
    %v976 = vadd.f32 %v971, %v578
    %v977 = vxor.u32 %v975, 2147483648
    %v978 = vmul.f32 %v977, 1.442695
    %v979 = vpow.pop %v978
    %v980 = vadd.f32 %v979, 1.0
    %v981 = vrcp.pop %v980
    %v982 = vmul.f32 1.0, %v981
    %v983 = vtanh.pop %v976
    %v984 = vxor.u32 %v976, 2147483648
    %v985 = vmul.f32 %v984, 1.442695
    %v986 = vpow.pop %v985
    %v987 = vadd.f32 %v986, 1.0
    %v988 = vrcp.pop %v987
    %v989 = vmul.f32 1.0, %v988
    %v990 = vmul.f32 %v982, %v803
    %v991 = vmul.f32 %v982, %v983
    %993 = vrot.lane.b32.xlu0 %v991, 64
    %v994 = vpop.permute.xlu0 %993
    %v996 = vadd.f32 %v990, %v994
    %v997 = vtanh.pop %v996
    %v998 = vmul.f32 %v989, %v997
    %v999 = vmul.f32 %v998, %v611
    %1001 = vrot.lane.b32.xlu0 %v999, 64
    %v1002 = vpop.permute.xlu0 %1001
    %v1004 = vsel %vm332, %v1002, 0.0
    %1005 = vadd.xlane.f32.xlu0 %v1004
    %v1006 = vpop.xlane.xlu0 %1005
    %1007 = vmatprep.subr.bf16.mxu0 %v317
    %1008 = vmatpush1.bf16.msra.mxu0 %v316
    %1009 = vmatprep.subr.bf16.mxu0 %v319
    %1010 = vmatpush1.bf16.msra.mxu0 %v318
    %1011 = vmatprep.subr.bf16.mxu0 %v321
    %1012 = vmatpush1.bf16.msra.mxu0 %v320
    %1013 = vmatprep.subr.bf16.mxu0 %v323
    %1014 = vmatpush1.bf16.msra.mxu0 %v322
    %1015 = vmatprep.subr.bf16.mxu0 0
    %1016 = vmatpush1.bf16.msra.mxu0 0
    %1017 = vmatprep.subr.bf16.mxu0 0
    %1018 = vmatpush1.bf16.msra.mxu0 0
    %1019 = vmatprep.subr.bf16.mxu0 0
    %1020 = vmatpush1.bf16.msra.mxu0 0
    %1021 = vmatprep.subr.bf16.mxu0 0
    %1022 = vmatpush1.bf16.msra.mxu0 0
    %1023 = vmatprep.subr.bf16.mxu0 0
    %1024 = vmatpush1.bf16.msra.mxu0 0
    %1025 = vmatprep.subr.bf16.mxu0 0
    %1026 = vmatpush1.bf16.msra.mxu0 0
    %1027 = vmatprep.subr.bf16.mxu0 0
    %1028 = vmatpush1.bf16.msra.mxu0 0
    %1029 = vmatprep.subr.bf16.mxu0 0
    %1030 = vmatpush1.bf16.msra.mxu0 0
    %1031 = vmatprep.subr.bf16.mxu0 0
    %1032 = vmatpush1.bf16.msra.mxu0 0
    %1033 = vmatprep.subr.bf16.mxu0 0
    %1034 = vmatpush1.bf16.msra.mxu0 0
    %1035 = vmatprep.subr.bf16.mxu0 0
    %1036 = vmatpush1.bf16.msra.mxu0 0
    %1037 = vmatprep.subr.bf16.mxu0 0
    %1038 = vmatpush1.bf16.msra.mxu0 0
    %1039 = vmatprep.mubr.bf16.mxu0 0
    %1040 = vmatmul.mubr.bf16.gmra.mrb[0].mxu0 %v932
    %v1041 = vpop.f32.mrb[0].mxu0
    %v1042 = vadd.f32 0.0, %v1041
    %v1043 = vpop.f32.mrb[0].mxu0
    %v1044 = vadd.f32 0.0, %v1043
    %v1045 = vpop.f32.mrb[0].mxu0
    %v1046 = vpop.f32.mrb[0].mxu0
    %1047 = vdwg.mxu0
    %v1048 = vadd.f32 %v260, %v1042
    %v1049 = vadd.f32 %v262, %v1044
    %v1050 = vxor.u32 %v1048, 2147483648
    %v1051 = vmul.f32 %v1050, 1.442695
    %v1052 = vpow.pop %v1051
    %v1053 = vadd.f32 %v1052, 1.0
    %v1054 = vrcp.pop %v1053
    %v1055 = vmul.f32 1.0, %v1054
    %v1056 = vtanh.pop %v1049
    %v1057 = vxor.u32 %v1049, 2147483648
    %v1058 = vmul.f32 %v1057, 1.442695
    %v1059 = vpow.pop %v1058
    %v1060 = vadd.f32 %v1059, 1.0
    %v1061 = vrcp.pop %v1060
    %v1062 = vmul.f32 1.0, %v1061
    %v1063 = vmul.f32 %v1055, %v876
    %v1064 = vmul.f32 %v1055, %v1056
    %1066 = vrot.lane.b32.xlu0 %v1064, 64
    %v1067 = vpop.permute.xlu0 %1066
    %v1069 = vadd.f32 %v1063, %v1067
    %v1070 = vtanh.pop %v1069
    %v1071 = vmul.f32 %v1062, %v1070
    %v1072 = vpack.c.bf16 %v1071, %v1071
    %v1073 = vpack.c.bf16 %v998, %v998
    %1075 = vrot.lane.b32.xlu0 %v1073, 64
    %v1076 = vpop.permute.xlu0 %1075
    %v1078 = vsel %vm332, %v1076, 0
    %1080 = vmatprep.subr.bf16.mxu0 %v427
    %1081 = vmatpush1.bf16.msra.mxu0 %v426
    %1082 = vmatprep.subr.bf16.mxu0 %v429
    %1083 = vmatpush1.bf16.msra.mxu0 %v428
    %1084 = vmatprep.subr.bf16.mxu0 %v431
    %1085 = vmatpush1.bf16.msra.mxu0 %v430
    %1086 = vmatprep.subr.bf16.mxu0 %v433
    %1087 = vmatpush1.bf16.msra.mxu0 %v432
    %1088 = vmatprep.subr.bf16.mxu0 0
    %1089 = vmatpush1.bf16.msra.mxu0 0
    %1090 = vmatprep.subr.bf16.mxu0 0
    %1091 = vmatpush1.bf16.msra.mxu0 0
    %1092 = vmatprep.subr.bf16.mxu0 0
    %1093 = vmatpush1.bf16.msra.mxu0 0
    %1094 = vmatprep.subr.bf16.mxu0 0
    %1095 = vmatpush1.bf16.msra.mxu0 0
    %1096 = vmatprep.subr.bf16.mxu0 0
    %1097 = vmatpush1.bf16.msra.mxu0 0
    %1098 = vmatprep.subr.bf16.mxu0 0
    %1099 = vmatpush1.bf16.msra.mxu0 0
    %1100 = vmatprep.subr.bf16.mxu0 0
    %1101 = vmatpush1.bf16.msra.mxu0 0
    %1102 = vmatprep.subr.bf16.mxu0 0
    %1103 = vmatpush1.bf16.msra.mxu0 0
    %1104 = vmatprep.subr.bf16.mxu0 0
    %1105 = vmatpush1.bf16.msra.mxu0 0
    %1106 = vmatprep.subr.bf16.mxu0 0
    %1107 = vmatpush1.bf16.msra.mxu0 0
    %1108 = vmatprep.subr.bf16.mxu0 0
    %1109 = vmatpush1.bf16.msra.mxu0 0
    %1110 = vmatprep.subr.bf16.mxu0 0
    %1111 = vmatpush1.bf16.msra.mxu0 0
    %1112 = vmatprep.mubr.bf16.mxu0 0
    %1113 = vmatmul.mubr.bf16.gmra.mrb[0].mxu0 %v1078
    %v1114 = vpop.f32.mrb[0].mxu0
    %v1115 = vadd.f32 0.0, %v1114
    %v1116 = vpop.f32.mrb[0].mxu0
    %v1117 = vadd.f32 0.0, %v1116
    %v1118 = vpop.f32.mrb[0].mxu0
    %v1119 = vpop.f32.mrb[0].mxu0
    %1120 = vdwg.mxu0
    %1122 = vrot.lane.b32.xlu0 %v1072, 64
    %v1123 = vpop.permute.xlu0 %1122
    %v1125 = vsel %vm332, %v1123, 0
    %1127 = vmatprep.subr.bf16.mxu0 %v511
    %1128 = vmatpush1.bf16.msra.mxu0 %v510
    %1129 = vmatprep.subr.bf16.mxu0 %v513
    %1130 = vmatpush1.bf16.msra.mxu0 %v512
    %1131 = vmatprep.subr.bf16.mxu0 %v515
    %1132 = vmatpush1.bf16.msra.mxu0 %v514
    %1133 = vmatprep.subr.bf16.mxu0 %v517
    %1134 = vmatpush1.bf16.msra.mxu0 %v516
    %1135 = vmatprep.subr.bf16.mxu0 0
    %1136 = vmatpush1.bf16.msra.mxu0 0
    %1137 = vmatprep.subr.bf16.mxu0 0
    %1138 = vmatpush1.bf16.msra.mxu0 0
    %1139 = vmatprep.subr.bf16.mxu0 0
    %1140 = vmatpush1.bf16.msra.mxu0 0
    %1141 = vmatprep.subr.bf16.mxu0 0
    %1142 = vmatpush1.bf16.msra.mxu0 0
    %1143 = vmatprep.subr.bf16.mxu0 0
    %1144 = vmatpush1.bf16.msra.mxu0 0
    %1145 = vmatprep.subr.bf16.mxu0 0
    %1146 = vmatpush1.bf16.msra.mxu0 0
    %1147 = vmatprep.subr.bf16.mxu0 0
    %1148 = vmatpush1.bf16.msra.mxu0 0
    %1149 = vmatprep.subr.bf16.mxu0 0
    %1150 = vmatpush1.bf16.msra.mxu0 0
    %1151 = vmatprep.subr.bf16.mxu0 0
    %1152 = vmatpush1.bf16.msra.mxu0 0
    %1153 = vmatprep.subr.bf16.mxu0 0
    %1154 = vmatpush1.bf16.msra.mxu0 0
    %1155 = vmatprep.subr.bf16.mxu0 0
    %1156 = vmatpush1.bf16.msra.mxu0 0
    %1157 = vmatprep.subr.bf16.mxu0 0
    %1158 = vmatpush1.bf16.msra.mxu0 0
    %1159 = vmatprep.mubr.bf16.mxu0 0
    %1160 = vmatmul.mubr.bf16.gmra.mrb[0].mxu0 %v1125
    %v1161 = vpop.f32.mrb[0].mxu0
    %v1162 = vadd.f32 %v1115, %v1161
    %v1163 = vpop.f32.mrb[0].mxu0
    %v1164 = vadd.f32 %v1117, %v1163
    %v1165 = vpop.f32.mrb[0].mxu0
    %v1166 = vpop.f32.mrb[0].mxu0
    %1167 = vdwg.mxu0
    %v1168 = vadd.f32 %v1162, %v574
    %v1169 = vadd.f32 %v1164, %v578
    %v1170 = vxor.u32 %v1168, 2147483648
    %v1171 = vmul.f32 %v1170, 1.442695
    %v1172 = vpow.pop %v1171
    %v1173 = vadd.f32 %v1172, 1.0
    %v1174 = vrcp.pop %v1173
    %v1175 = vmul.f32 1.0, %v1174
    %v1176 = vtanh.pop %v1169
    %v1177 = vxor.u32 %v1169, 2147483648
    %v1178 = vmul.f32 %v1177, 1.442695
    %v1179 = vpow.pop %v1178
    %v1180 = vadd.f32 %v1179, 1.0
    %v1181 = vrcp.pop %v1180
    %v1182 = vmul.f32 1.0, %v1181
    %v1183 = vmul.f32 %v1175, %v996
    %v1184 = vmul.f32 %v1175, %v1176
    %1186 = vrot.lane.b32.xlu0 %v1184, 64
    %v1187 = vpop.permute.xlu0 %1186
    %v1189 = vadd.f32 %v1183, %v1187
    %v1190 = vtanh.pop %v1189
    %v1191 = vmul.f32 %v1182, %v1190
    %v1192 = vmul.f32 %v1191, %v611
    %1194 = vrot.lane.b32.xlu0 %v1192, 64
    %v1195 = vpop.permute.xlu0 %1194
    %v1197 = vsel %vm332, %v1195, 0.0
    %1198 = vadd.xlane.f32.xlu0 %v1197
    %v1199 = vpop.xlane.xlu0 %1198
    %1200 = vmatprep.subr.bf16.mxu0 %v317
    %1201 = vmatpush1.bf16.msra.mxu0 %v316
    %1202 = vmatprep.subr.bf16.mxu0 %v319
    %1203 = vmatpush1.bf16.msra.mxu0 %v318
    %1204 = vmatprep.subr.bf16.mxu0 %v321
    %1205 = vmatpush1.bf16.msra.mxu0 %v320
    %1206 = vmatprep.subr.bf16.mxu0 %v323
    %1207 = vmatpush1.bf16.msra.mxu0 %v322
    %1208 = vmatprep.subr.bf16.mxu0 0
    %1209 = vmatpush1.bf16.msra.mxu0 0
    %1210 = vmatprep.subr.bf16.mxu0 0
    %1211 = vmatpush1.bf16.msra.mxu0 0
    %1212 = vmatprep.subr.bf16.mxu0 0
    %1213 = vmatpush1.bf16.msra.mxu0 0
    %1214 = vmatprep.subr.bf16.mxu0 0
    %1215 = vmatpush1.bf16.msra.mxu0 0
    %1216 = vmatprep.subr.bf16.mxu0 0
    %1217 = vmatpush1.bf16.msra.mxu0 0
    %1218 = vmatprep.subr.bf16.mxu0 0
    %1219 = vmatpush1.bf16.msra.mxu0 0
    %1220 = vmatprep.subr.bf16.mxu0 0
    %1221 = vmatpush1.bf16.msra.mxu0 0
    %1222 = vmatprep.subr.bf16.mxu0 0
    %1223 = vmatpush1.bf16.msra.mxu0 0
    %1224 = vmatprep.subr.bf16.mxu0 0
    %1225 = vmatpush1.bf16.msra.mxu0 0
    %1226 = vmatprep.subr.bf16.mxu0 0
    %1227 = vmatpush1.bf16.msra.mxu0 0
    %1228 = vmatprep.subr.bf16.mxu0 0
    %1229 = vmatpush1.bf16.msra.mxu0 0
    %1230 = vmatprep.subr.bf16.mxu0 0
    %1231 = vmatpush1.bf16.msra.mxu0 0
    %1232 = vmatprep.mubr.bf16.mxu0 0
    %1233 = vmatmul.mubr.bf16.gmra.mrb[0].mxu0 %v1125
    %v1234 = vpop.f32.mrb[0].mxu0
    %v1235 = vadd.f32 0.0, %v1234
    %v1236 = vpop.f32.mrb[0].mxu0
    %v1237 = vadd.f32 0.0, %v1236
    %v1238 = vpop.f32.mrb[0].mxu0
    %v1239 = vpop.f32.mrb[0].mxu0
    %1240 = vdwg.mxu0
    %v1241 = vadd.f32 %v260, %v1235
    %v1242 = vadd.f32 %v262, %v1237
    %v1243 = vxor.u32 %v1241, 2147483648
    %v1244 = vmul.f32 %v1243, 1.442695
    %v1245 = vpow.pop %v1244
    %v1246 = vadd.f32 %v1245, 1.0
    %v1247 = vrcp.pop %v1246
    %v1248 = vmul.f32 1.0, %v1247
    %v1249 = vtanh.pop %v1242
    %v1250 = vxor.u32 %v1242, 2147483648
    %v1251 = vmul.f32 %v1250, 1.442695
    %v1252 = vpow.pop %v1251
    %v1253 = vadd.f32 %v1252, 1.0
    %v1254 = vrcp.pop %v1253
    %v1255 = vmul.f32 1.0, %v1254
    %v1256 = vmul.f32 %v1248, %v1069
    %v1257 = vmul.f32 %v1248, %v1249
    %1259 = vrot.lane.b32.xlu0 %v1257, 64
    %v1260 = vpop.permute.xlu0 %1259
    %v1262 = vadd.f32 %v1256, %v1260
    %v1263 = vtanh.pop %v1262
    %v1264 = vmul.f32 %v1255, %v1263
    %v1265 = vpack.c.bf16 %v1264, %v1264
    %v1266 = vpack.c.bf16 %v1191, %v1191
    %1268 = vrot.lane.b32.xlu0 %v1266, 64
    %v1269 = vpop.permute.xlu0 %1268
    %v1271 = vsel %vm332, %v1269, 0
    %1273 = vmatprep.subr.bf16.mxu0 %v427
    %1274 = vmatpush1.bf16.msra.mxu0 %v426
    %1275 = vmatprep.subr.bf16.mxu0 %v429
    %1276 = vmatpush1.bf16.msra.mxu0 %v428
    %1277 = vmatprep.subr.bf16.mxu0 %v431
    %1278 = vmatpush1.bf16.msra.mxu0 %v430
    %1279 = vmatprep.subr.bf16.mxu0 %v433
    %1280 = vmatpush1.bf16.msra.mxu0 %v432
    %1281 = vmatprep.subr.bf16.mxu0 0
    %1282 = vmatpush1.bf16.msra.mxu0 0
    %1283 = vmatprep.subr.bf16.mxu0 0
    %1284 = vmatpush1.bf16.msra.mxu0 0
    %1285 = vmatprep.subr.bf16.mxu0 0
    %1286 = vmatpush1.bf16.msra.mxu0 0
    %1287 = vmatprep.subr.bf16.mxu0 0
    %1288 = vmatpush1.bf16.msra.mxu0 0
    %1289 = vmatprep.subr.bf16.mxu0 0
    %1290 = vmatpush1.bf16.msra.mxu0 0
    %1291 = vmatprep.subr.bf16.mxu0 0
    %1292 = vmatpush1.bf16.msra.mxu0 0
    %1293 = vmatprep.subr.bf16.mxu0 0
    %1294 = vmatpush1.bf16.msra.mxu0 0
    %1295 = vmatprep.subr.bf16.mxu0 0
    %1296 = vmatpush1.bf16.msra.mxu0 0
    %1297 = vmatprep.subr.bf16.mxu0 0
    %1298 = vmatpush1.bf16.msra.mxu0 0
    %1299 = vmatprep.subr.bf16.mxu0 0
    %1300 = vmatpush1.bf16.msra.mxu0 0
    %1301 = vmatprep.subr.bf16.mxu0 0
    %1302 = vmatpush1.bf16.msra.mxu0 0
    %1303 = vmatprep.subr.bf16.mxu0 0
    %1304 = vmatpush1.bf16.msra.mxu0 0
    %1305 = vmatprep.mubr.bf16.mxu0 0
    %1306 = vmatmul.mubr.bf16.gmra.mrb[0].mxu0 %v1271
    %v1307 = vpop.f32.mrb[0].mxu0
    %v1308 = vadd.f32 0.0, %v1307
    %v1309 = vpop.f32.mrb[0].mxu0
    %v1310 = vadd.f32 0.0, %v1309
    %v1311 = vpop.f32.mrb[0].mxu0
    %v1312 = vpop.f32.mrb[0].mxu0
    %1313 = vdwg.mxu0
    %1315 = vrot.lane.b32.xlu0 %v1265, 64
    %v1316 = vpop.permute.xlu0 %1315
    %v1318 = vsel %vm332, %v1316, 0
    %1320 = vmatprep.subr.bf16.mxu0 %v511
    %1321 = vmatpush1.bf16.msra.mxu0 %v510
    %1322 = vmatprep.subr.bf16.mxu0 %v513
    %1323 = vmatpush1.bf16.msra.mxu0 %v512
    %1324 = vmatprep.subr.bf16.mxu0 %v515
    %1325 = vmatpush1.bf16.msra.mxu0 %v514
    %1326 = vmatprep.subr.bf16.mxu0 %v517
    %1327 = vmatpush1.bf16.msra.mxu0 %v516
    %1328 = vmatprep.subr.bf16.mxu0 0
    %1329 = vmatpush1.bf16.msra.mxu0 0
    %1330 = vmatprep.subr.bf16.mxu0 0
    %1331 = vmatpush1.bf16.msra.mxu0 0
    %1332 = vmatprep.subr.bf16.mxu0 0
    %1333 = vmatpush1.bf16.msra.mxu0 0
    %1334 = vmatprep.subr.bf16.mxu0 0
    %1335 = vmatpush1.bf16.msra.mxu0 0
    %1336 = vmatprep.subr.bf16.mxu0 0
    %1337 = vmatpush1.bf16.msra.mxu0 0
    %1338 = vmatprep.subr.bf16.mxu0 0
    %1339 = vmatpush1.bf16.msra.mxu0 0
    %1340 = vmatprep.subr.bf16.mxu0 0
    %1341 = vmatpush1.bf16.msra.mxu0 0
    %1342 = vmatprep.subr.bf16.mxu0 0
    %1343 = vmatpush1.bf16.msra.mxu0 0
    %1344 = vmatprep.subr.bf16.mxu0 0
    %1345 = vmatpush1.bf16.msra.mxu0 0
    %1346 = vmatprep.subr.bf16.mxu0 0
    %1347 = vmatpush1.bf16.msra.mxu0 0
    %1348 = vmatprep.subr.bf16.mxu0 0
    %1349 = vmatpush1.bf16.msra.mxu0 0
    %1350 = vmatprep.subr.bf16.mxu0 0
    %1351 = vmatpush1.bf16.msra.mxu0 0
    %1352 = vmatprep.mubr.bf16.mxu0 0
    %1353 = vmatmul.mubr.bf16.gmra.mrb[0].mxu0 %v1318
    %v1354 = vpop.f32.mrb[0].mxu0
    %v1355 = vadd.f32 %v1308, %v1354
    %v1356 = vpop.f32.mrb[0].mxu0
    %v1357 = vadd.f32 %v1310, %v1356
    %v1358 = vpop.f32.mrb[0].mxu0
    %v1359 = vpop.f32.mrb[0].mxu0
    %1360 = vdwg.mxu0
    %v1361 = vadd.f32 %v1355, %v574
    %v1362 = vadd.f32 %v1357, %v578
    %v1363 = vxor.u32 %v1361, 2147483648
    %v1364 = vmul.f32 %v1363, 1.442695
    %v1365 = vpow.pop %v1364
    %v1366 = vadd.f32 %v1365, 1.0
    %v1367 = vrcp.pop %v1366
    %v1368 = vmul.f32 1.0, %v1367
    %v1369 = vtanh.pop %v1362
    %v1370 = vxor.u32 %v1362, 2147483648
    %v1371 = vmul.f32 %v1370, 1.442695
    %v1372 = vpow.pop %v1371
    %v1373 = vadd.f32 %v1372, 1.0
    %v1374 = vrcp.pop %v1373
    %v1375 = vmul.f32 1.0, %v1374
    %v1376 = vmul.f32 %v1368, %v1189
    %v1377 = vmul.f32 %v1368, %v1369
    %1379 = vrot.lane.b32.xlu0 %v1377, 64
    %v1380 = vpop.permute.xlu0 %1379
    %v1382 = vadd.f32 %v1376, %v1380
    %v1383 = vtanh.pop %v1382
    %v1384 = vmul.f32 %v1375, %v1383
    %v1385 = vmul.f32 %v1384, %v611
    %1387 = vrot.lane.b32.xlu0 %v1385, 64
    %v1388 = vpop.permute.xlu0 %1387
    %v1390 = vsel %vm332, %v1388, 0.0
    %1391 = vadd.xlane.f32.xlu0 %v1390
    %v1392 = vpop.xlane.xlu0 %1391
    %1393 = vmatprep.subr.bf16.mxu0 %v317
    %1394 = vmatpush1.bf16.msra.mxu0 %v316
    %1395 = vmatprep.subr.bf16.mxu0 %v319
    %1396 = vmatpush1.bf16.msra.mxu0 %v318
    %1397 = vmatprep.subr.bf16.mxu0 %v321
    %1398 = vmatpush1.bf16.msra.mxu0 %v320
    %1399 = vmatprep.subr.bf16.mxu0 %v323
    %1400 = vmatpush1.bf16.msra.mxu0 %v322
    %1401 = vmatprep.subr.bf16.mxu0 0
    %1402 = vmatpush1.bf16.msra.mxu0 0
    %1403 = vmatprep.subr.bf16.mxu0 0
    %1404 = vmatpush1.bf16.msra.mxu0 0
    %1405 = vmatprep.subr.bf16.mxu0 0
    %1406 = vmatpush1.bf16.msra.mxu0 0
    %1407 = vmatprep.subr.bf16.mxu0 0
    %1408 = vmatpush1.bf16.msra.mxu0 0
    %1409 = vmatprep.subr.bf16.mxu0 0
    %1410 = vmatpush1.bf16.msra.mxu0 0
    %1411 = vmatprep.subr.bf16.mxu0 0
    %1412 = vmatpush1.bf16.msra.mxu0 0
    %1413 = vmatprep.subr.bf16.mxu0 0
    %1414 = vmatpush1.bf16.msra.mxu0 0
    %1415 = vmatprep.subr.bf16.mxu0 0
    %1416 = vmatpush1.bf16.msra.mxu0 0
    %1417 = vmatprep.subr.bf16.mxu0 0
    %1418 = vmatpush1.bf16.msra.mxu0 0
    %1419 = vmatprep.subr.bf16.mxu0 0
    %1420 = vmatpush1.bf16.msra.mxu0 0
    %1421 = vmatprep.subr.bf16.mxu0 0
    %1422 = vmatpush1.bf16.msra.mxu0 0
    %1423 = vmatprep.subr.bf16.mxu0 0
    %1424 = vmatpush1.bf16.msra.mxu0 0
    %1425 = vmatprep.mubr.bf16.mxu0 0
    %1426 = vmatmul.mubr.bf16.gmra.mrb[0].mxu0 %v1318
    %v1427 = vpop.f32.mrb[0].mxu0
    %v1428 = vadd.f32 0.0, %v1427
    %v1429 = vpop.f32.mrb[0].mxu0
    %v1430 = vadd.f32 0.0, %v1429
    %v1431 = vpop.f32.mrb[0].mxu0
    %v1432 = vpop.f32.mrb[0].mxu0
    %1433 = vdwg.mxu0
    %v1434 = vadd.f32 %v260, %v1428
    %v1435 = vadd.f32 %v262, %v1430
    %v1436 = vxor.u32 %v1434, 2147483648
    %v1437 = vmul.f32 %v1436, 1.442695
    %v1438 = vpow.pop %v1437
    %v1439 = vadd.f32 %v1438, 1.0
    %v1440 = vrcp.pop %v1439
    %v1441 = vmul.f32 1.0, %v1440
    %v1442 = vtanh.pop %v1435
    %v1443 = vxor.u32 %v1435, 2147483648
    %v1444 = vmul.f32 %v1443, 1.442695
    %v1445 = vpow.pop %v1444
    %v1446 = vadd.f32 %v1445, 1.0
    %v1447 = vrcp.pop %v1446
    %v1448 = vmul.f32 1.0, %v1447
    %v1449 = vmul.f32 %v1441, %v1262
    %v1450 = vmul.f32 %v1441, %v1442
    %1452 = vrot.lane.b32.xlu0 %v1450, 64
    %v1453 = vpop.permute.xlu0 %1452
    %v1455 = vadd.f32 %v1449, %v1453
    %v1456 = vtanh.pop %v1455
    %v1457 = vmul.f32 %v1448, %v1456
    %v1458 = vpack.c.bf16 %v1457, %v1457
    %v1459 = vpack.c.bf16 %v1384, %v1384
    %1461 = vrot.lane.b32.xlu0 %v1459, 64
    %v1462 = vpop.permute.xlu0 %1461
    %v1464 = vsel %vm332, %v1462, 0
    %1466 = vmatprep.subr.bf16.mxu0 %v427
    %1467 = vmatpush1.bf16.msra.mxu0 %v426
    %1468 = vmatprep.subr.bf16.mxu0 %v429
    %1469 = vmatpush1.bf16.msra.mxu0 %v428
    %1470 = vmatprep.subr.bf16.mxu0 %v431
    %1471 = vmatpush1.bf16.msra.mxu0 %v430
    %1472 = vmatprep.subr.bf16.mxu0 %v433
    %1473 = vmatpush1.bf16.msra.mxu0 %v432
    %1474 = vmatprep.subr.bf16.mxu0 0
    %1475 = vmatpush1.bf16.msra.mxu0 0
    %1476 = vmatprep.subr.bf16.mxu0 0
    %1477 = vmatpush1.bf16.msra.mxu0 0
    %1478 = vmatprep.subr.bf16.mxu0 0
    %1479 = vmatpush1.bf16.msra.mxu0 0
    %1480 = vmatprep.subr.bf16.mxu0 0
    %1481 = vmatpush1.bf16.msra.mxu0 0
    %1482 = vmatprep.subr.bf16.mxu0 0
    %1483 = vmatpush1.bf16.msra.mxu0 0
    %1484 = vmatprep.subr.bf16.mxu0 0
    %1485 = vmatpush1.bf16.msra.mxu0 0
    %1486 = vmatprep.subr.bf16.mxu0 0
    %1487 = vmatpush1.bf16.msra.mxu0 0
    %1488 = vmatprep.subr.bf16.mxu0 0
    %1489 = vmatpush1.bf16.msra.mxu0 0
    %1490 = vmatprep.subr.bf16.mxu0 0
    %1491 = vmatpush1.bf16.msra.mxu0 0
    %1492 = vmatprep.subr.bf16.mxu0 0
    %1493 = vmatpush1.bf16.msra.mxu0 0
    %1494 = vmatprep.subr.bf16.mxu0 0
    %1495 = vmatpush1.bf16.msra.mxu0 0
    %1496 = vmatprep.subr.bf16.mxu0 0
    %1497 = vmatpush1.bf16.msra.mxu0 0
    %1498 = vmatprep.mubr.bf16.mxu0 0
    %1499 = vmatmul.mubr.bf16.gmra.mrb[0].mxu0 %v1464
    %v1500 = vpop.f32.mrb[0].mxu0
    %v1501 = vadd.f32 0.0, %v1500
    %v1502 = vpop.f32.mrb[0].mxu0
    %v1503 = vadd.f32 0.0, %v1502
    %v1504 = vpop.f32.mrb[0].mxu0
    %v1505 = vpop.f32.mrb[0].mxu0
    %1506 = vdwg.mxu0
    %1508 = vrot.lane.b32.xlu0 %v1458, 64
    %v1509 = vpop.permute.xlu0 %1508
    %v1511 = vsel %vm332, %v1509, 0
    %1513 = vmatprep.subr.bf16.mxu0 %v511
    %1514 = vmatpush1.bf16.msra.mxu0 %v510
    %1515 = vmatprep.subr.bf16.mxu0 %v513
    %1516 = vmatpush1.bf16.msra.mxu0 %v512
    %1517 = vmatprep.subr.bf16.mxu0 %v515
    %1518 = vmatpush1.bf16.msra.mxu0 %v514
    %1519 = vmatprep.subr.bf16.mxu0 %v517
    %1520 = vmatpush1.bf16.msra.mxu0 %v516
    %1521 = vmatprep.subr.bf16.mxu0 0
    %1522 = vmatpush1.bf16.msra.mxu0 0
    %1523 = vmatprep.subr.bf16.mxu0 0
    %1524 = vmatpush1.bf16.msra.mxu0 0
    %1525 = vmatprep.subr.bf16.mxu0 0
    %1526 = vmatpush1.bf16.msra.mxu0 0
    %1527 = vmatprep.subr.bf16.mxu0 0
    %1528 = vmatpush1.bf16.msra.mxu0 0
    %1529 = vmatprep.subr.bf16.mxu0 0
    %1530 = vmatpush1.bf16.msra.mxu0 0
    %1531 = vmatprep.subr.bf16.mxu0 0
    %1532 = vmatpush1.bf16.msra.mxu0 0
    %1533 = vmatprep.subr.bf16.mxu0 0
    %1534 = vmatpush1.bf16.msra.mxu0 0
    %1535 = vmatprep.subr.bf16.mxu0 0
    %1536 = vmatpush1.bf16.msra.mxu0 0
    %1537 = vmatprep.subr.bf16.mxu0 0
    %1538 = vmatpush1.bf16.msra.mxu0 0
    %1539 = vmatprep.subr.bf16.mxu0 0
    %1540 = vmatpush1.bf16.msra.mxu0 0
    %1541 = vmatprep.subr.bf16.mxu0 0
    %1542 = vmatpush1.bf16.msra.mxu0 0
    %1543 = vmatprep.subr.bf16.mxu0 0
    %1544 = vmatpush1.bf16.msra.mxu0 0
    %1545 = vmatprep.mubr.bf16.mxu0 0
    %1546 = vmatmul.mubr.bf16.gmra.mrb[0].mxu0 %v1511
    %v1547 = vpop.f32.mrb[0].mxu0
    %v1548 = vadd.f32 %v1501, %v1547
    %v1549 = vpop.f32.mrb[0].mxu0
    %v1550 = vadd.f32 %v1503, %v1549
    %v1551 = vpop.f32.mrb[0].mxu0
    %v1552 = vpop.f32.mrb[0].mxu0
    %1553 = vdwg.mxu0
    %v1554 = vadd.f32 %v1548, %v574
    %v1555 = vadd.f32 %v1550, %v578
    %v1556 = vxor.u32 %v1554, 2147483648
    %v1557 = vmul.f32 %v1556, 1.442695
    %v1558 = vpow.pop %v1557
    %v1559 = vadd.f32 %v1558, 1.0
    %v1560 = vrcp.pop %v1559
    %v1561 = vmul.f32 1.0, %v1560
    %v1562 = vtanh.pop %v1555
    %v1563 = vxor.u32 %v1555, 2147483648
    %v1564 = vmul.f32 %v1563, 1.442695
    %v1565 = vpow.pop %v1564
    %v1566 = vadd.f32 %v1565, 1.0
    %v1567 = vrcp.pop %v1566
    %v1568 = vmul.f32 1.0, %v1567
    %v1569 = vmul.f32 %v1561, %v1382
    %v1570 = vmul.f32 %v1561, %v1562
    %1572 = vrot.lane.b32.xlu0 %v1570, 64
    %v1573 = vpop.permute.xlu0 %1572
    %v1575 = vadd.f32 %v1569, %v1573
    %v1576 = vtanh.pop %v1575
    %v1577 = vmul.f32 %v1568, %v1576
    %v1578 = vmul.f32 %v1577, %v611
    %1580 = vrot.lane.b32.xlu0 %v1578, 64
    %v1581 = vpop.permute.xlu0 %1580
    %v1583 = vsel %vm332, %v1581, 0.0
    %1584 = vadd.xlane.f32.xlu0 %v1583
    %v1585 = vpop.xlane.xlu0 %1584
    %1586 = vmatprep.subr.bf16.mxu0 %v317
    %1587 = vmatpush1.bf16.msra.mxu0 %v316
    %1588 = vmatprep.subr.bf16.mxu0 %v319
    %1589 = vmatpush1.bf16.msra.mxu0 %v318
    %1590 = vmatprep.subr.bf16.mxu0 %v321
    %1591 = vmatpush1.bf16.msra.mxu0 %v320
    %1592 = vmatprep.subr.bf16.mxu0 %v323
    %1593 = vmatpush1.bf16.msra.mxu0 %v322
    %1594 = vmatprep.subr.bf16.mxu0 0
    %1595 = vmatpush1.bf16.msra.mxu0 0
    %1596 = vmatprep.subr.bf16.mxu0 0
    %1597 = vmatpush1.bf16.msra.mxu0 0
    %1598 = vmatprep.subr.bf16.mxu0 0
    %1599 = vmatpush1.bf16.msra.mxu0 0
    %1600 = vmatprep.subr.bf16.mxu0 0
    %1601 = vmatpush1.bf16.msra.mxu0 0
    %1602 = vmatprep.subr.bf16.mxu0 0
    %1603 = vmatpush1.bf16.msra.mxu0 0
    %1604 = vmatprep.subr.bf16.mxu0 0
    %1605 = vmatpush1.bf16.msra.mxu0 0
    %1606 = vmatprep.subr.bf16.mxu0 0
    %1607 = vmatpush1.bf16.msra.mxu0 0
    %1608 = vmatprep.subr.bf16.mxu0 0
    %1609 = vmatpush1.bf16.msra.mxu0 0
    %1610 = vmatprep.subr.bf16.mxu0 0
    %1611 = vmatpush1.bf16.msra.mxu0 0
    %1612 = vmatprep.subr.bf16.mxu0 0
    %1613 = vmatpush1.bf16.msra.mxu0 0
    %1614 = vmatprep.subr.bf16.mxu0 0
    %1615 = vmatpush1.bf16.msra.mxu0 0
    %1616 = vmatprep.subr.bf16.mxu0 0
    %1617 = vmatpush1.bf16.msra.mxu0 0
    %1618 = vmatprep.mubr.bf16.mxu0 0
    %1619 = vmatmul.mubr.bf16.gmra.mrb[0].mxu0 %v1511
    %v1620 = vpop.f32.mrb[0].mxu0
    %v1621 = vadd.f32 0.0, %v1620
    %v1622 = vpop.f32.mrb[0].mxu0
    %v1623 = vadd.f32 0.0, %v1622
    %v1624 = vpop.f32.mrb[0].mxu0
    %v1625 = vpop.f32.mrb[0].mxu0
    %1626 = vdwg.mxu0
    %v1627 = vadd.f32 %v260, %v1621
    %v1628 = vadd.f32 %v262, %v1623
    %v1629 = vxor.u32 %v1627, 2147483648
    %v1630 = vmul.f32 %v1629, 1.442695
    %v1631 = vpow.pop %v1630
    %v1632 = vadd.f32 %v1631, 1.0
    %v1633 = vrcp.pop %v1632
    %v1634 = vmul.f32 1.0, %v1633
    %v1635 = vtanh.pop %v1628
    %v1636 = vxor.u32 %v1628, 2147483648
    %v1637 = vmul.f32 %v1636, 1.442695
    %v1638 = vpow.pop %v1637
    %v1639 = vadd.f32 %v1638, 1.0
    %v1640 = vrcp.pop %v1639
    %v1641 = vmul.f32 1.0, %v1640
    %v1642 = vmul.f32 %v1634, %v1455
    %v1643 = vmul.f32 %v1634, %v1635
    %1645 = vrot.lane.b32.xlu0 %v1643, 64
    %v1646 = vpop.permute.xlu0 %1645
    %v1648 = vadd.f32 %v1642, %v1646
    %v1649 = vtanh.pop %v1648
    %v1650 = vmul.f32 %v1641, %v1649
    %v1651 = vpack.c.bf16 %v1650, %v1650
    %v1652 = vpack.c.bf16 %v1577, %v1577
    %1654 = vrot.lane.b32.xlu0 %v1652, 64
    %v1655 = vpop.permute.xlu0 %1654
    %v1657 = vsel %vm332, %v1655, 0
    %1659 = vmatprep.subr.bf16.mxu0 %v427
    %1660 = vmatpush1.bf16.msra.mxu0 %v426
    %1661 = vmatprep.subr.bf16.mxu0 %v429
    %1662 = vmatpush1.bf16.msra.mxu0 %v428
    %1663 = vmatprep.subr.bf16.mxu0 %v431
    %1664 = vmatpush1.bf16.msra.mxu0 %v430
    %1665 = vmatprep.subr.bf16.mxu0 %v433
    %1666 = vmatpush1.bf16.msra.mxu0 %v432
    %1667 = vmatprep.subr.bf16.mxu0 0
    %1668 = vmatpush1.bf16.msra.mxu0 0
    %1669 = vmatprep.subr.bf16.mxu0 0
    %1670 = vmatpush1.bf16.msra.mxu0 0
    %1671 = vmatprep.subr.bf16.mxu0 0
    %1672 = vmatpush1.bf16.msra.mxu0 0
    %1673 = vmatprep.subr.bf16.mxu0 0
    %1674 = vmatpush1.bf16.msra.mxu0 0
    %1675 = vmatprep.subr.bf16.mxu0 0
    %1676 = vmatpush1.bf16.msra.mxu0 0
    %1677 = vmatprep.subr.bf16.mxu0 0
    %1678 = vmatpush1.bf16.msra.mxu0 0
    %1679 = vmatprep.subr.bf16.mxu0 0
    %1680 = vmatpush1.bf16.msra.mxu0 0
    %1681 = vmatprep.subr.bf16.mxu0 0
    %1682 = vmatpush1.bf16.msra.mxu0 0
    %1683 = vmatprep.subr.bf16.mxu0 0
    %1684 = vmatpush1.bf16.msra.mxu0 0
    %1685 = vmatprep.subr.bf16.mxu0 0
    %1686 = vmatpush1.bf16.msra.mxu0 0
    %1687 = vmatprep.subr.bf16.mxu0 0
    %1688 = vmatpush1.bf16.msra.mxu0 0
    %1689 = vmatprep.subr.bf16.mxu0 0
    %1690 = vmatpush1.bf16.msra.mxu0 0
    %1691 = vmatprep.mubr.bf16.mxu0 0
    %1692 = vmatmul.mubr.bf16.gmra.mrb[0].mxu0 %v1657
    %v1693 = vpop.f32.mrb[0].mxu0
    %v1694 = vadd.f32 0.0, %v1693
    %v1695 = vpop.f32.mrb[0].mxu0
    %v1696 = vadd.f32 0.0, %v1695
    %v1697 = vpop.f32.mrb[0].mxu0
    %v1698 = vpop.f32.mrb[0].mxu0
    %1699 = vdwg.mxu0
    %1701 = vrot.lane.b32.xlu0 %v1651, 64
    %v1702 = vpop.permute.xlu0 %1701
    %v1704 = vsel %vm332, %v1702, 0
    %1706 = vmatprep.subr.bf16.mxu0 %v511
    %1707 = vmatpush1.bf16.msra.mxu0 %v510
    %1708 = vmatprep.subr.bf16.mxu0 %v513
    %1709 = vmatpush1.bf16.msra.mxu0 %v512
    %1710 = vmatprep.subr.bf16.mxu0 %v515
    %1711 = vmatpush1.bf16.msra.mxu0 %v514
    %1712 = vmatprep.subr.bf16.mxu0 %v517
    %1713 = vmatpush1.bf16.msra.mxu0 %v516
    %1714 = vmatprep.subr.bf16.mxu0 0
    %1715 = vmatpush1.bf16.msra.mxu0 0
    %1716 = vmatprep.subr.bf16.mxu0 0
    %1717 = vmatpush1.bf16.msra.mxu0 0
    %1718 = vmatprep.subr.bf16.mxu0 0
    %1719 = vmatpush1.bf16.msra.mxu0 0
    %1720 = vmatprep.subr.bf16.mxu0 0
    %1721 = vmatpush1.bf16.msra.mxu0 0
    %1722 = vmatprep.subr.bf16.mxu0 0
    %1723 = vmatpush1.bf16.msra.mxu0 0
    %1724 = vmatprep.subr.bf16.mxu0 0
    %1725 = vmatpush1.bf16.msra.mxu0 0
    %1726 = vmatprep.subr.bf16.mxu0 0
    %1727 = vmatpush1.bf16.msra.mxu0 0
    %1728 = vmatprep.subr.bf16.mxu0 0
    %1729 = vmatpush1.bf16.msra.mxu0 0
    %1730 = vmatprep.subr.bf16.mxu0 0
    %1731 = vmatpush1.bf16.msra.mxu0 0
    %1732 = vmatprep.subr.bf16.mxu0 0
    %1733 = vmatpush1.bf16.msra.mxu0 0
    %1734 = vmatprep.subr.bf16.mxu0 0
    %1735 = vmatpush1.bf16.msra.mxu0 0
    %1736 = vmatprep.subr.bf16.mxu0 0
    %1737 = vmatpush1.bf16.msra.mxu0 0
    %1738 = vmatprep.mubr.bf16.mxu0 0
    %1739 = vmatmul.mubr.bf16.gmra.mrb[0].mxu0 %v1704
    %v1740 = vpop.f32.mrb[0].mxu0
    %v1741 = vadd.f32 %v1694, %v1740
    %v1742 = vpop.f32.mrb[0].mxu0
    %v1743 = vadd.f32 %v1696, %v1742
    %v1744 = vpop.f32.mrb[0].mxu0
    %v1745 = vpop.f32.mrb[0].mxu0
    %1746 = vdwg.mxu0
    %v1747 = vadd.f32 %v1741, %v574
    %v1748 = vadd.f32 %v1743, %v578
    %v1749 = vxor.u32 %v1747, 2147483648
    %v1750 = vmul.f32 %v1749, 1.442695
    %v1751 = vpow.pop %v1750
    %v1752 = vadd.f32 %v1751, 1.0
    %v1753 = vrcp.pop %v1752
    %v1754 = vmul.f32 1.0, %v1753
    %v1755 = vtanh.pop %v1748
    %v1756 = vxor.u32 %v1748, 2147483648
    %v1757 = vmul.f32 %v1756, 1.442695
    %v1758 = vpow.pop %v1757
    %v1759 = vadd.f32 %v1758, 1.0
    %v1760 = vrcp.pop %v1759
    %v1761 = vmul.f32 1.0, %v1760
    %v1762 = vmul.f32 %v1754, %v1575
    %v1763 = vmul.f32 %v1754, %v1755
    %1765 = vrot.lane.b32.xlu0 %v1763, 64
    %v1766 = vpop.permute.xlu0 %1765
    %v1768 = vadd.f32 %v1762, %v1766
    %v1769 = vtanh.pop %v1768
    %v1770 = vmul.f32 %v1761, %v1769
    %v1771 = vmul.f32 %v1770, %v611
    %1773 = vrot.lane.b32.xlu0 %v1771, 64
    %v1774 = vpop.permute.xlu0 %1773
    %v1776 = vsel %vm332, %v1774, 0.0
    %1777 = vadd.xlane.f32.xlu0 %v1776
    %v1778 = vpop.xlane.xlu0 %1777
    %1779 = vmatprep.subr.bf16.mxu0 %v317
    %1780 = vmatpush1.bf16.msra.mxu0 %v316
    %1781 = vmatprep.subr.bf16.mxu0 %v319
    %1782 = vmatpush1.bf16.msra.mxu0 %v318
    %1783 = vmatprep.subr.bf16.mxu0 %v321
    %1784 = vmatpush1.bf16.msra.mxu0 %v320
    %1785 = vmatprep.subr.bf16.mxu0 %v323
    %1786 = vmatpush1.bf16.msra.mxu0 %v322
    %1787 = vmatprep.subr.bf16.mxu0 0
    %1788 = vmatpush1.bf16.msra.mxu0 0
    %1789 = vmatprep.subr.bf16.mxu0 0
    %1790 = vmatpush1.bf16.msra.mxu0 0
    %1791 = vmatprep.subr.bf16.mxu0 0
    %1792 = vmatpush1.bf16.msra.mxu0 0
    %1793 = vmatprep.subr.bf16.mxu0 0
    %1794 = vmatpush1.bf16.msra.mxu0 0
    %1795 = vmatprep.subr.bf16.mxu0 0
    %1796 = vmatpush1.bf16.msra.mxu0 0
    %1797 = vmatprep.subr.bf16.mxu0 0
    %1798 = vmatpush1.bf16.msra.mxu0 0
    %1799 = vmatprep.subr.bf16.mxu0 0
    %1800 = vmatpush1.bf16.msra.mxu0 0
    %1801 = vmatprep.subr.bf16.mxu0 0
    %1802 = vmatpush1.bf16.msra.mxu0 0
    %1803 = vmatprep.subr.bf16.mxu0 0
    %1804 = vmatpush1.bf16.msra.mxu0 0
    %1805 = vmatprep.subr.bf16.mxu0 0
    %1806 = vmatpush1.bf16.msra.mxu0 0
    %1807 = vmatprep.subr.bf16.mxu0 0
    %1808 = vmatpush1.bf16.msra.mxu0 0
    %1809 = vmatprep.subr.bf16.mxu0 0
    %1810 = vmatpush1.bf16.msra.mxu0 0
    %1811 = vmatprep.mubr.bf16.mxu0 0
    %1812 = vmatmul.mubr.bf16.gmra.mrb[0].mxu0 %v1704
    %v1813 = vpop.f32.mrb[0].mxu0
    %v1814 = vadd.f32 0.0, %v1813
    %v1815 = vpop.f32.mrb[0].mxu0
    %v1816 = vadd.f32 0.0, %v1815
    %v1817 = vpop.f32.mrb[0].mxu0
    %v1818 = vpop.f32.mrb[0].mxu0
    %1819 = vdwg.mxu0
    %v1820 = vadd.f32 %v260, %v1814
    %v1821 = vadd.f32 %v262, %v1816
    %v1822 = vxor.u32 %v1820, 2147483648
    %v1823 = vmul.f32 %v1822, 1.442695
    %v1824 = vpow.pop %v1823
    %v1825 = vadd.f32 %v1824, 1.0
    %v1826 = vrcp.pop %v1825
    %v1827 = vmul.f32 1.0, %v1826
    %v1828 = vtanh.pop %v1821
    %v1829 = vxor.u32 %v1821, 2147483648
    %v1830 = vmul.f32 %v1829, 1.442695
    %v1831 = vpow.pop %v1830
    %v1832 = vadd.f32 %v1831, 1.0
    %v1833 = vrcp.pop %v1832
    %v1834 = vmul.f32 1.0, %v1833
    %v1835 = vmul.f32 %v1827, %v1648
    %v1836 = vmul.f32 %v1827, %v1828
    %1838 = vrot.lane.b32.xlu0 %v1836, 64
    %v1839 = vpop.permute.xlu0 %1838
    %v1841 = vadd.f32 %v1835, %v1839
    %v1842 = vtanh.pop %v1841
    %v1843 = vmul.f32 %v1834, %v1842
    %v1844 = vpack.c.bf16 %v1843, %v1843
    %v1845 = vpack.c.bf16 %v1770, %v1770
    %1847 = vrot.lane.b32.xlu0 %v1845, 64
    %v1848 = vpop.permute.xlu0 %1847
    %v1850 = vsel %vm332, %v1848, 0
    %1852 = vmatprep.subr.bf16.mxu0 %v427
    %1853 = vmatpush1.bf16.msra.mxu0 %v426
    %1854 = vmatprep.subr.bf16.mxu0 %v429
    %1855 = vmatpush1.bf16.msra.mxu0 %v428
    %1856 = vmatprep.subr.bf16.mxu0 %v431
    %1857 = vmatpush1.bf16.msra.mxu0 %v430
    %1858 = vmatprep.subr.bf16.mxu0 %v433
    %1859 = vmatpush1.bf16.msra.mxu0 %v432
    %1860 = vmatprep.subr.bf16.mxu0 0
    %1861 = vmatpush1.bf16.msra.mxu0 0
    %1862 = vmatprep.subr.bf16.mxu0 0
    %1863 = vmatpush1.bf16.msra.mxu0 0
    %1864 = vmatprep.subr.bf16.mxu0 0
    %1865 = vmatpush1.bf16.msra.mxu0 0
    %1866 = vmatprep.subr.bf16.mxu0 0
    %1867 = vmatpush1.bf16.msra.mxu0 0
    %1868 = vmatprep.subr.bf16.mxu0 0
    %1869 = vmatpush1.bf16.msra.mxu0 0
    %1870 = vmatprep.subr.bf16.mxu0 0
    %1871 = vmatpush1.bf16.msra.mxu0 0
    %1872 = vmatprep.subr.bf16.mxu0 0
    %1873 = vmatpush1.bf16.msra.mxu0 0
    %1874 = vmatprep.subr.bf16.mxu0 0
    %1875 = vmatpush1.bf16.msra.mxu0 0
    %1876 = vmatprep.subr.bf16.mxu0 0
    %1877 = vmatpush1.bf16.msra.mxu0 0
    %1878 = vmatprep.subr.bf16.mxu0 0
    %1879 = vmatpush1.bf16.msra.mxu0 0
    %1880 = vmatprep.subr.bf16.mxu0 0
    %1881 = vmatpush1.bf16.msra.mxu0 0
    %1882 = vmatprep.subr.bf16.mxu0 0
    %1883 = vmatpush1.bf16.msra.mxu0 0
    %1884 = vmatprep.mubr.bf16.mxu0 0
    %1885 = vmatmul.mubr.bf16.gmra.mrb[0].mxu0 %v1850
    %v1886 = vpop.f32.mrb[0].mxu0
    %v1887 = vadd.f32 0.0, %v1886
    %v1888 = vpop.f32.mrb[0].mxu0
    %v1889 = vadd.f32 0.0, %v1888
    %v1890 = vpop.f32.mrb[0].mxu0
    %v1891 = vpop.f32.mrb[0].mxu0
    %1892 = vdwg.mxu0
    %1894 = vrot.lane.b32.xlu0 %v1844, 64
    %v1895 = vpop.permute.xlu0 %1894
    %v1897 = vsel %vm332, %v1895, 0
    %1899 = vmatprep.subr.bf16.mxu0 %v511
    %1900 = vmatpush1.bf16.msra.mxu0 %v510
    %1901 = vmatprep.subr.bf16.mxu0 %v513
    %1902 = vmatpush1.bf16.msra.mxu0 %v512
    %1903 = vmatprep.subr.bf16.mxu0 %v515
    %1904 = vmatpush1.bf16.msra.mxu0 %v514
    %1905 = vmatprep.subr.bf16.mxu0 %v517
    %1906 = vmatpush1.bf16.msra.mxu0 %v516
    %1907 = vmatprep.subr.bf16.mxu0 0
    %1908 = vmatpush1.bf16.msra.mxu0 0
    %1909 = vmatprep.subr.bf16.mxu0 0
    %1910 = vmatpush1.bf16.msra.mxu0 0
    %1911 = vmatprep.subr.bf16.mxu0 0
    %1912 = vmatpush1.bf16.msra.mxu0 0
    %1913 = vmatprep.subr.bf16.mxu0 0
    %1914 = vmatpush1.bf16.msra.mxu0 0
    %1915 = vmatprep.subr.bf16.mxu0 0
    %1916 = vmatpush1.bf16.msra.mxu0 0
    %1917 = vmatprep.subr.bf16.mxu0 0
    %1918 = vmatpush1.bf16.msra.mxu0 0
    %1919 = vmatprep.subr.bf16.mxu0 0
    %1920 = vmatpush1.bf16.msra.mxu0 0
    %1921 = vmatprep.subr.bf16.mxu0 0
    %1922 = vmatpush1.bf16.msra.mxu0 0
    %1923 = vmatprep.subr.bf16.mxu0 0
    %1924 = vmatpush1.bf16.msra.mxu0 0
    %1925 = vmatprep.subr.bf16.mxu0 0
    %1926 = vmatpush1.bf16.msra.mxu0 0
    %1927 = vmatprep.subr.bf16.mxu0 0
    %1928 = vmatpush1.bf16.msra.mxu0 0
    %1929 = vmatprep.subr.bf16.mxu0 0
    %1930 = vmatpush1.bf16.msra.mxu0 0
    %1931 = vmatprep.mubr.bf16.mxu0 0
    %1932 = vmatmul.mubr.bf16.gmra.mrb[0].mxu0 %v1897
    %v1933 = vpop.f32.mrb[0].mxu0
    %v1934 = vadd.f32 %v1887, %v1933
    %v1935 = vpop.f32.mrb[0].mxu0
    %v1936 = vadd.f32 %v1889, %v1935
    %v1937 = vpop.f32.mrb[0].mxu0
    %v1938 = vpop.f32.mrb[0].mxu0
    %1939 = vdwg.mxu0
    %v1940 = vadd.f32 %v1934, %v574
    %v1941 = vadd.f32 %v1936, %v578
    %v1942 = vxor.u32 %v1940, 2147483648
    %v1943 = vmul.f32 %v1942, 1.442695
    %v1944 = vpow.pop %v1943
    %v1945 = vadd.f32 %v1944, 1.0
    %v1946 = vrcp.pop %v1945
    %v1947 = vmul.f32 1.0, %v1946
    %v1948 = vtanh.pop %v1941
    %v1949 = vxor.u32 %v1941, 2147483648
    %v1950 = vmul.f32 %v1949, 1.442695
    %v1951 = vpow.pop %v1950
    %v1952 = vadd.f32 %v1951, 1.0
    %v1953 = vrcp.pop %v1952
    %v1954 = vmul.f32 1.0, %v1953
    %v1955 = vmul.f32 %v1947, %v1768
    %v1956 = vmul.f32 %v1947, %v1948
    %1958 = vrot.lane.b32.xlu0 %v1956, 64
    %v1959 = vpop.permute.xlu0 %1958
    %v1961 = vadd.f32 %v1955, %v1959
    %v1962 = vtanh.pop %v1961
    %v1963 = vmul.f32 %v1954, %v1962
    %v1964 = vmul.f32 %v1963, %v611
    %1966 = vrot.lane.b32.xlu0 %v1964, 64
    %v1967 = vpop.permute.xlu0 %1966
    %v1969 = vsel %vm332, %v1967, 0.0
    %1970 = vadd.xlane.f32.xlu0 %v1969
    %v1971 = vpop.xlane.xlu0 %1970
    %vm1972 = vcmask 7168
    %v1973 = vsel %vm1972, %v620, %v813
    %vm1974 = vcmask 15360
    %v1975 = vsel %vm1974, %v1973, %v1006
    %vm1976 = vcmask 23552
    %v1977 = vsel %vm1976, %v1975, %v1199
    %vm1978 = vcmask 31744
    %v1979 = vsel %vm1978, %v1977, %v1392
    %vm1980 = vcmask 39936
    %v1981 = vsel %vm1980, %v1979, %v1585
    %vm1982 = vcmask 48128
    %v1983 = vsel %vm1982, %v1981, %v1778
    %vm1984 = vcmask 56320
    %v1985 = vsel %vm1984, %v1983, %v1971
    %v1986 = vld [vmem:[#allocation2] sm:$0x1]
    %v1988 = vlaneseq
    %v1989 = vshrl.u32 %v1988, 7
    %v1990 = vsub.s32 0, %v1989
    %v1991 = vrot.slane %v1986, %v1990
    %1992 = vset.pattern.permute.xlu0 0
    %1993 = vperm.xlu0 %1992, %v1991
    %v1994 = vpop.permute.xlu0 %1993
    %v1996 = vadd.f32 %v1985, %v1994
    %vm1997 = vcmp.gt.f32.partialorder %v1996, 0.99
    %v1998 = vsel %vm1997, 1.0, %v1996
    %vm1999 = vcmask 64512
    %2000 = vst.msk [vmem:[#allocation14] sm:$0xff] %vm1999, %v1998
    // Predicated region
    $region70: #{tpu_custom_call.1} parent=1 // pred_check
      _
    $region71: #{tpu_custom_call.1} parent=1 // pred_check_branch
      %2002 = sbr.rel (0) target = $region73
    $region72: #{tpu_custom_call.1} parent=1 // pred_region
      %s2004 = ssub.s32 128, 128
      %2005 = vsyncadd [#allocation5], %s2004
      %s2007 = sshll.u32 [#allocation14], 4
      %s2008 = int_to_ptr.vmem [resolvable:$true] %s2007
      %2010 = dma.vmem_to_hbm [thread:$0]  %s2008, 128, %s11, [#allocation5]
    $region73: #{tpu_custom_call.1} parent=1 // pred_fallthru
      _
    // Predicated region
    $region74: #{tpu_custom_call.1} parent=1 // pred_check
      _
    $region75: #{tpu_custom_call.1} parent=1 // pred_check_branch
      %2012 = sbr.rel (0) target = $region77
    $region76: #{tpu_custom_call.1} parent=1 // pred_region
      %2013 = dma.done [#allocation5], 128
    $region77: #{tpu_custom_call.1} parent=1 // pred_fallthru
      _
    %2014 = vsyncpa [#allocation4], 1
    %2015 = vsyncpa [#allocation7], 1
    %2016 = vsyncpa [#allocation10], 1
    %2017 = vsyncpa [#allocation13], 1
    %2018 = vsyncpa [#allocation5], 1

</llo_original>
